<compile_context>
chip_gen: v6e
topology: v6e:2x2x1
jax: 0.10.0
libtpu: 0.0.40
codegen_flags: <defaults>
</compile_context>

<pallas_src>
import functools

import jax
import jax.numpy as jnp
from jax.experimental import pallas as pl
from jax.experimental.pallas import tpu as pltpu


FEAT_DIM = 1000      # MobileNetV2 backbone output dim
FEAT_PAD = 1024      # padded to a 128-lane multiple
CLASS_PAD = 128      # padded class dim (lane-dense output stores)
TN = 512             # feature-column tile (2 tiles -> shards across v7x's 2 TCs)


def _round_up(x, m):
    return ((x + m - 1) // m) * m


def _mobilenetv2_kernel(x_ref, w_vit_ref, b_vit_ref, w_fc_ref, out_ref, acc_ref):
    """Grid = (n, k):  n over feature-column tiles, k over the f_in reduction.

    acc[:, n-tile]  += x[:, k-tile] @ w_vit[k-tile, n-tile]     (bf16 in, f32 acc)
    at the last k:   out[n] = (acc + b_vit[n-tile]) @ w_fc[n-tile]   (partial logits)

    Partial logits over n-tiles are summed (and fc bias added) in the glue.
    """
    k = pl.program_id(1)

    @pl.when(k == 0)
    def _():
        acc_ref[...] = jnp.zeros_like(acc_ref)

    acc_ref[...] += jnp.dot(x_ref[...], w_vit_ref[...],
                            preferred_element_type=jnp.float32)

    @pl.when(k == pl.num_programs(1) - 1)
    def _():
        feats = acc_ref[...] + b_vit_ref[...]                     # (B_pad, TN) f32
        partial = jnp.dot(feats, w_fc_ref[...],
                          preferred_element_type=jnp.float32)     # (B_pad, CLASS_PAD)
        out_ref[...] = partial[None, :, :].astype(out_ref.dtype)


@functools.partial(jax.jit, static_argnames=("tk_max",))
def mobilenetv2_forward(x_nchw, params, *, tk_max=2048):
    """x_nchw: (B, C, H, W) float32.  Returns (B, class_num) float32."""
    B = x_nchw.shape[0]
    x_flat = x_nchw.reshape(B, -1).astype(jnp.float32)
    f_in = x_flat.shape[1]
    class_num = params["fc_weight"].shape[0]

    # --- tiling choices -------------------------------------------------------
    tk = min(tk_max, _round_up(f_in, 128))     # K tile (large for v5e's slow HBM)
    f_in_pad = _round_up(f_in, tk)
    b_pad = _round_up(max(B, 8), 8)            # at least 8 sublanes of useful rows
    k_tiles = f_in_pad // tk
    n_tiles = FEAT_PAD // TN

    # --- pad + cast operands (zero padding is exact for the matmuls) ----------
    x_p = jnp.zeros((b_pad, f_in_pad), jnp.bfloat16).at[:B, :f_in].set(
        x_flat.astype(jnp.bfloat16))
    w_vit = jnp.zeros((f_in_pad, FEAT_PAD), jnp.bfloat16).at[:f_in, :FEAT_DIM].set(
        params["vit_weight"].astype(jnp.bfloat16))
    b_vit = jnp.zeros((1, FEAT_PAD), jnp.float32).at[0, :FEAT_DIM].set(
        params["vit_bias"].astype(jnp.float32))
    # PyTorch Linear stores weight as (out, in); transpose to (in, out).
    w_fc = jnp.zeros((FEAT_PAD, CLASS_PAD), jnp.float32).at[:FEAT_DIM, :class_num].set(
        params["fc_weight"].T.astype(jnp.float32))

    cost = pl.CostEstimate(
        flops=2 * b_pad * f_in_pad * FEAT_PAD + 2 * b_pad * FEAT_PAD * CLASS_PAD,
        transcendentals=0,
        bytes_accessed=(w_vit.size * 2 + x_p.size * 2 + w_fc.size * 4
                        + b_vit.size * 4 + n_tiles * b_pad * CLASS_PAD * 4),
    )

    partials = pl.pallas_call(
        _mobilenetv2_kernel,
        out_shape=jax.ShapeDtypeStruct((n_tiles, b_pad, CLASS_PAD), jnp.float32),
        grid=(n_tiles, k_tiles),
        in_specs=[
            pl.BlockSpec((b_pad, tk), lambda n, k: (0, k)),        # x (bf16, tiny)
            pl.BlockSpec((tk, TN), lambda n, k: (k, n)),           # w_vit (streamed)
            pl.BlockSpec((1, TN), lambda n, k: (0, n)),            # b_vit
            pl.BlockSpec((TN, CLASS_PAD), lambda n, k: (n, 0)),    # w_fc
        ],
        out_specs=pl.BlockSpec((1, b_pad, CLASS_PAD), lambda n, k: (n, 0, 0)),
        scratch_shapes=[pltpu.VMEM((b_pad, TN), jnp.float32)],
        compiler_params=pltpu.CompilerParams(
            dimension_semantics=("parallel", "arbitrary")),
        cost_estimate=cost,
    )(x_p, w_vit, b_vit, w_fc)

    # Tiny epilogue in plain JAX: sum the per-N-tile partial logits, un-pad,
    # add the fc bias.
    logits = partials.sum(axis=0)[:B, :class_num] + params["fc_bias"][None, :]
    return logits


def init_params(key, f_in, feat_dim=FEAT_DIM, class_num=10):
    k1, k2, k3, k4 = jax.random.split(key, 4)
    scale_vit = 1.0 / jnp.sqrt(jnp.float32(f_in))
    scale_fc = 1.0 / jnp.sqrt(jnp.float32(feat_dim))
    return {
        # Deterministic stand-in for the pretrained backbone.
        "vit_weight": jax.random.uniform(k1, (f_in, feat_dim), jnp.float32,
                                         -scale_vit, scale_vit),
        "vit_bias": jax.random.uniform(k2, (feat_dim,), jnp.float32,
                                       -scale_vit, scale_vit),
        # nn.Linear(1000, class_num): weight (out, in), bias (out,)
        "fc_weight": jax.random.uniform(k3, (class_num, feat_dim), jnp.float32,
                                        -scale_fc, scale_fc),
        "fc_bias": jax.random.uniform(k4, (class_num,), jnp.float32,
                                      -scale_fc, scale_fc),
    }


if __name__ == "__main__":
    key = jax.random.PRNGKey(0)
    k_x, k_p = jax.random.split(key)

    B, C, H, W = 2, 4, 16, 16          # small image-like input (NCHW, like PyTorch)
    class_num = 10
    x = jax.random.normal(k_x, (B, C, H, W), jnp.float32)

    params = init_params(k_p, f_in=C * H * W, feat_dim=FEAT_DIM, class_num=class_num)

    # tk_max=512 so the small demo exercises multiple K steps of the accumulator.
    out = mobilenetv2_forward(x, params, tk_max=512)
    out = jax.block_until_ready(out)

    # Reference in plain JAX with the same bf16 weight-streaming precision.
    x_flat = x.reshape(B, -1)
    feats_ref = jnp.dot(x_flat.astype(jnp.bfloat16),
                        params["vit_weight"].astype(jnp.bfloat16),
                        preferred_element_type=jnp.float32) + params["vit_bias"]
    ref = jnp.dot(feats_ref, params["fc_weight"].T,
                  preferred_element_type=jnp.float32) + params["fc_bias"]

    assert out.shape == (B, class_num)
    assert jnp.allclose(out, ref, atol=1e-2, rtol=1e-2), float(jnp.max(jnp.abs(out - ref)))

    print("KERNEL_OK")
</pallas_src>

<mosaic_0001>
module attributes {stable_mosaic.version = 11 : i64} {
  func.func @_mobilenetv2_kernel(%arg0: i32, %arg1: i32, %arg2: memref<8x512xbf16, #tpu.memory_space<vmem>>, %arg3: memref<512x512xbf16, #tpu.memory_space<vmem>>, %arg4: memref<1x512xf32, #tpu.memory_space<vmem>>, %arg5: memref<512x128xf32, #tpu.memory_space<vmem>>, %arg6: memref<1x8x128xf32, #tpu.memory_space<vmem>>, %arg7: memref<8x512xf32, #tpu.memory_space<vmem>>) attributes {dimension_semantics = [#tpu.dimension_semantics<parallel>, #tpu.dimension_semantics<arbitrary>], iteration_bounds = array<i64: 2, 2>, scalar_prefetch = 0 : i64, scratch_operands = 1 : i64, tpu.core_type = #tpu.core_type<tc>, window_params = [{transform_indices = @transform_0, window_bounds = array<i64: 8, 512>}, {transform_indices = @transform_1, window_bounds = array<i64: 512, 512>}, {transform_indices = @transform_2, window_bounds = array<i64: 1, 512>}, {transform_indices = @transform_3, window_bounds = array<i64: 512, 128>}, {transform_indices = @transform_4, window_bounds = array<i64: 1, 8, 128>}]} {
    %c0_i32 = arith.constant 0 : i32
    %0 = arith.cmpi eq, %arg1, %c0_i32 : i32
    %1 = arith.extui %0 : i1 to i32
    %c0_i32_0 = arith.constant 0 : i32
    %2 = arith.cmpi ne, %1, %c0_i32_0 : i32
    scf.if %2 {
      %cst_9 = arith.constant 0.000000e+00 : f32
      %12 = vector.broadcast %cst_9 : f32 to vector<8x512xf32>
      %c0_10 = arith.constant 0 : index
      %c0_11 = arith.constant 0 : index
      %13 = vector.load %arg7[%c0_10, %c0_11] : memref<8x512xf32, #tpu.memory_space<vmem>>, vector<8x512xf32>
      tpu.vector_store %arg7[%c0_10, %c0_11], %12 {strides = array<i32>} : memref<8x512xf32, #tpu.memory_space<vmem>>, vector<8x512xf32>,
    } else {
    }
    %c0 = arith.constant 0 : index
    %c0_1 = arith.constant 0 : index
    %3 = vector.load %arg7[%c0, %c0_1] : memref<8x512xf32, #tpu.memory_space<vmem>>, vector<8x512xf32>
    %c0_2 = arith.constant 0 : index
    %c0_3 = arith.constant 0 : index
    %4 = vector.load %arg2[%c0_2, %c0_3] : memref<8x512xbf16, #tpu.memory_space<vmem>>, vector<8x512xbf16>
    %c0_4 = arith.constant 0 : index
    %c0_5 = arith.constant 0 : index
    %5 = vector.load %arg3[%c0_4, %c0_5] : memref<512x512xbf16, #tpu.memory_space<vmem>>, vector<512x512xbf16>
    %cst = arith.constant dense<0.000000e+00> : vector<8x512xf32>
    %6 = tpu.matmul %4, %5, %cst {dimension_numbers = #tpu.dot_dimension_numbers<[1], [0], [0], [1], [0, 0, 1, 1], [], []>} : vector<8x512xbf16>, vector<512x512xbf16>, vector<8x512xf32> -> vector<8x512xf32>
    %7 = arith.addf %3, %6 : vector<8x512xf32>
    %c0_6 = arith.constant 0 : index
    %c0_7 = arith.constant 0 : index
    %8 = vector.load %arg7[%c0_6, %c0_7] : memref<8x512xf32, #tpu.memory_space<vmem>>, vector<8x512xf32>
    tpu.vector_store %arg7[%c0_6, %c0_7], %7 {strides = array<i32>} : memref<8x512xf32, #tpu.memory_space<vmem>>, vector<8x512xf32>,
    %c1_i32 = arith.constant 1 : i32
    %9 = arith.cmpi eq, %arg1, %c1_i32 : i32
    %10 = arith.extui %9 : i1 to i32
    %c0_i32_8 = arith.constant 0 : i32
    %11 = arith.cmpi ne, %10, %c0_i32_8 : i32
    scf.if %11 {
      %c0_9 = arith.constant 0 : index
      %c0_10 = arith.constant 0 : index
      %12 = vector.load %arg7[%c0_9, %c0_10] : memref<8x512xf32, #tpu.memory_space<vmem>>, vector<8x512xf32>
      %c0_11 = arith.constant 0 : index
      %c0_12 = arith.constant 0 : index
      %13 = vector.load %arg4[%c0_11, %c0_12] : memref<1x512xf32, #tpu.memory_space<vmem>>, vector<1x512xf32>
      %14 = vector.broadcast %13 : vector<1x512xf32> to vector<8x512xf32>
      %15 = arith.addf %12, %14 : vector<8x512xf32>
      %c0_13 = arith.constant 0 : index
      %c0_14 = arith.constant 0 : index
      %16 = vector.load %arg5[%c0_13, %c0_14] : memref<512x128xf32, #tpu.memory_space<vmem>>, vector<512x128xf32>
      %cst_15 = arith.constant dense<0.000000e+00> : vector<8x128xf32>
      %17 = tpu.matmul %15, %16, %cst_15 {dimension_numbers = #tpu.dot_dimension_numbers<[1], [0], [0], [1], [0, 0, 1, 1], [], []>} : vector<8x512xf32>, vector<512x128xf32>, vector<8x128xf32> -> vector<8x128xf32>
      %18 = vector.shape_cast %17 : vector<8x128xf32> to vector<1x8x128xf32>
      %c0_16 = arith.constant 0 : index
      %c0_17 = arith.constant 0 : index
      %c0_18 = arith.constant 0 : index
      %19 = vector.load %arg6[%c0_16, %c0_17, %c0_18] : memref<1x8x128xf32, #tpu.memory_space<vmem>>, vector<1x8x128xf32>
      tpu.vector_store %arg6[%c0_16, %c0_17, %c0_18], %18 {strides = array<i32>} : memref<1x8x128xf32, #tpu.memory_space<vmem>>, vector<1x8x128xf32>,
    } else {
    }
    return
  }
  func.func @transform_0(%arg0: i32, %arg1: i32) -> (i32, i32) {
    %c0_i32 = arith.constant 0 : i32
    %c0_i32_0 = arith.constant 0 : i32
    return %c0_i32, %arg1 : i32, i32
  }
  func.func @transform_1(%arg0: i32, %arg1: i32) -> (i32, i32) {
    %c0_i32 = arith.constant 0 : i32
    return %arg1, %arg0 : i32, i32
  }
  func.func @transform_2(%arg0: i32, %arg1: i32) -> (i32, i32) {
    %c0_i32 = arith.constant 0 : i32
    %c0_i32_0 = arith.constant 0 : i32
    return %c0_i32, %arg0 : i32, i32
  }
  func.func @transform_3(%arg0: i32, %arg1: i32) -> (i32, i32) {
    %c0_i32 = arith.constant 0 : i32
    %c0_i32_0 = arith.constant 0 : i32
    return %arg0, %c0_i32 : i32, i32
  }
  func.func @transform_4(%arg0: i32, %arg1: i32) -> (i32, i32, i32) {
    %c0_i32 = arith.constant 0 : i32
    %c0_i32_0 = arith.constant 0 : i32
    %c0_i32_1 = arith.constant 0 : i32
    return %arg0, %c0_i32, %c0_i32_0 : i32, i32, i32
  }
}

</mosaic_0001>

<llo_original>
// kernel: mobilenetv2_forward.1
$region0: #{mobilenetv2_forward.1}
  #allocation0 [shape = 'u32[]', space=smem, size = 0x4, offset = 0x4, fixed_abs, tag = 'smem constant byte address 0x4 - core index']
  #allocation1 [shape = 'u32[144,128]{1,0:T(1,128)}', space=vmem, size = 0x12000, scoped, tag = 'internal scratch']
  #allocation2 [shape = 'f32[8,512]{1,0:T(8,128)}', space=vmem, size = 0x4000, scoped, tag = 'scratch operand']
  %s0 = inlined_call_operand.vmem [shape: bf16[8,1024], index: 0, kind: input, shape index: {}]
  %s1 = inlined_call_operand.vmem [shape: bf16[1024,1024], index: 1, kind: input, shape index: {}]
  %s2 = inlined_call_operand.vmem [shape: f32[1,1024], index: 2, kind: input, shape index: {}]
  %s3 = inlined_call_operand.vmem [shape: f32[1024,128], index: 3, kind: input, shape index: {}]
  %s4 = inlined_call_operand.vmem [shape: f32[2,8,128], index: 4, kind: output, shape index: {}]
  %s5 = sld [smem:[#allocation0]]
  $region80: #{mobilenetv2_forward.1} parent=0
    _
  %s7 = ssub.s32 1, %s5
  %s8 = scalar_select 0, %s7, %s5
  $region1: #{mobilenetv2_forward.1} parent=0
    #allocation3 [shape = 'u8[1048576]{0}', space=vmem, size = 0x100000, scoped, tag = 'input window, operand 1']
    loop: start=0, step=1, limit=6
    $region2: #{mobilenetv2_forward.1} parent=1 // loop_pre_header
      _
    $region3: #{mobilenetv2_forward.1} parent=1 // loop_header
      %s10 = sphi 0, %s14
      %p11 = scmp.ge.s32.totalorder %s10, 6
      %s17 = sphi 0, %s29
      %s18 = sphi 0, %s25
      %s19 = sphi 0, %s17
      %s20 = sphi 0, %s18
      %s21 = sphi 0, %s19
      %s22 = sphi 0, %s20
      %s32 = sphi 0, %s34
      %s35 = sphi 0, %s32
      %s36 = sphi 0, %s35
      %s52 = sphi 0, %s36
      %s60 = sphi 0, %s62
      %s63 = sphi 0, %s60
      %s64 = sphi 0, %s63
      %s80 = sphi 0, %s64
      %s86 = sphi 0, %s88
      %s89 = sphi 0, %s86
      %s90 = sphi 0, %s89
      %s106 = sphi 0, %s90
      %s112 = sphi 0, %s114
      %s115 = sphi 0, %s112
      %s116 = sphi 0, %s115
      %s132 = sphi 0, %s116
      %s138 = sphi 0, %s140
      %s141 = sphi 0, %s138
      %s142 = sphi 0, %s141
      %s158 = sphi 0, %s142
    $region4: #{mobilenetv2_forward.1} parent=1 // loop_header_branch
      %13 = sbr.rel (%p11) target = $region8
    $region5: #{mobilenetv2_forward.1} parent=1 // loop_body
      %s15 = ssub.s32 %s10, 1
      %s16 = ssub.s32 %s10, 2
      %s23 = sadd.s32 1, %s18
      %p24 = scmp.ge.s32.totalorder %s23, 2
      %s25 = scalar_select %p24, 0, %s23
      %s26 = sadd.s32 1, %s17
      %s27 = scalar_select %p24, %s26, %s17
      %p28 = scmp.ge.s32.totalorder %s27, 2
      %s29 = scalar_select %p28, 0, %s27
      %s30 = ssub.s32 %s18, %s25
      %p31 = scmp.eq.s32.totalorder %s30, 0
      %s33 = sadd.s32 %s32, 1
      %s34 = scalar_select %p31, %s32, %s33
      %p37 = pneg %p31
      %p38 = scmp.eq.s32.totalorder %s10, 3
      %p39 = por %p37, %p38
      %p40 = scmp.ne.s32.totalorder %s32, %s35
      %p41 = scmp.eq.s32.totalorder %s10, 0
      %p42 = por %p40, %p41
      %p43 = scmp.ne.s32.totalorder %s32, %s35
      %p44 = scmp.eq.s32.totalorder %s15, 3
      %p45 = por %p43, %p44
      %p46 = scmp.ne.s32.totalorder %s35, %s36
      %p47 = scmp.eq.s32.totalorder %s15, 0
      %p48 = por %p46, %p47
      %p49 = scmp.ne.s32.totalorder %s35, %s36
      %p50 = scmp.eq.s32.totalorder %s16, 3
      %p51 = por %p49, %p50
      %p53 = scmp.ne.s32.totalorder %s36, %s52
      %p54 = scmp.eq.s32.totalorder %s16, 0
      %p55 = por %p53, %p54
      %s56 = ssub.s32 %s18, %s25
      %s57 = ssub.s32 %s17, %s29
      %s58 = sor.u32 %s56, %s57
      %p59 = scmp.eq.s32.totalorder %s58, 0
      %s61 = sadd.s32 %s60, 1
      %s62 = scalar_select %p59, %s60, %s61
      %p65 = pneg %p59
      %p66 = scmp.eq.s32.totalorder %s10, 3
      %p67 = por %p65, %p66
      %p68 = scmp.ne.s32.totalorder %s60, %s63
      %p69 = scmp.eq.s32.totalorder %s10, 0
      %p70 = por %p68, %p69
      %p71 = scmp.ne.s32.totalorder %s60, %s63
      %p72 = scmp.eq.s32.totalorder %s15, 3
      %p73 = por %p71, %p72
      %p74 = scmp.ne.s32.totalorder %s63, %s64
      %p75 = scmp.eq.s32.totalorder %s15, 0
      %p76 = por %p74, %p75
      %p77 = scmp.ne.s32.totalorder %s63, %s64
      %p78 = scmp.eq.s32.totalorder %s16, 3
      %p79 = por %p77, %p78
      %p81 = scmp.ne.s32.totalorder %s64, %s80
      %p82 = scmp.eq.s32.totalorder %s16, 0
      %p83 = por %p81, %p82
      %s84 = ssub.s32 %s17, %s29
      %p85 = scmp.eq.s32.totalorder %s84, 0
      %s87 = sadd.s32 %s86, 1
      %s88 = scalar_select %p85, %s86, %s87
      %p91 = pneg %p85
      %p92 = scmp.eq.s32.totalorder %s10, 3
      %p93 = por %p91, %p92
      %p94 = scmp.ne.s32.totalorder %s86, %s89
      %p95 = scmp.eq.s32.totalorder %s10, 0
      %p96 = por %p94, %p95
      %p97 = scmp.ne.s32.totalorder %s86, %s89
      %p98 = scmp.eq.s32.totalorder %s15, 3
      %p99 = por %p97, %p98
      %p100 = scmp.ne.s32.totalorder %s89, %s90
      %p101 = scmp.eq.s32.totalorder %s15, 0
      %p102 = por %p100, %p101
      %p103 = scmp.ne.s32.totalorder %s89, %s90
      %p104 = scmp.eq.s32.totalorder %s16, 3
      %p105 = por %p103, %p104
      %p107 = scmp.ne.s32.totalorder %s90, %s106
      %p108 = scmp.eq.s32.totalorder %s16, 0
      %p109 = por %p107, %p108
      %s110 = ssub.s32 %s17, %s29
      %p111 = scmp.eq.s32.totalorder %s110, 0
      %s113 = sadd.s32 %s112, 1
      %s114 = scalar_select %p111, %s112, %s113
      %p117 = pneg %p111
      %p118 = scmp.eq.s32.totalorder %s10, 3
      %p119 = por %p117, %p118
      %p120 = scmp.ne.s32.totalorder %s112, %s115
      %p121 = scmp.eq.s32.totalorder %s10, 0
      %p122 = por %p120, %p121
      %p123 = scmp.ne.s32.totalorder %s112, %s115
      %p124 = scmp.eq.s32.totalorder %s15, 3
      %p125 = por %p123, %p124
      %p126 = scmp.ne.s32.totalorder %s115, %s116
      %p127 = scmp.eq.s32.totalorder %s15, 0
      %p128 = por %p126, %p127
      %p129 = scmp.ne.s32.totalorder %s115, %s116
      %p130 = scmp.eq.s32.totalorder %s16, 3
      %p131 = por %p129, %p130
      %p133 = scmp.ne.s32.totalorder %s116, %s132
      %p134 = scmp.eq.s32.totalorder %s16, 0
      %p135 = por %p133, %p134
      %s136 = ssub.s32 %s17, %s29
      %p137 = scmp.eq.s32.totalorder %s136, 0
      %s139 = sadd.s32 %s138, 1
      %s140 = scalar_select %p137, %s138, %s139
      %p143 = pneg %p137
      %p144 = scmp.eq.s32.totalorder %s10, 3
      %p145 = por %p143, %p144
      %p146 = scmp.ne.s32.totalorder %s138, %s141
      %p147 = scmp.eq.s32.totalorder %s10, 0
      %p148 = por %p146, %p147
      %p149 = scmp.ne.s32.totalorder %s138, %s141
      %p150 = scmp.eq.s32.totalorder %s15, 3
      %p151 = por %p149, %p150
      %p152 = scmp.ne.s32.totalorder %s141, %s142
      %p153 = scmp.eq.s32.totalorder %s15, 0
      %p154 = por %p152, %p153
      %p155 = scmp.ne.s32.totalorder %s141, %s142
      %p156 = scmp.eq.s32.totalorder %s16, 3
      %p157 = por %p155, %p156
      %p159 = scmp.ne.s32.totalorder %s142, %s158
      %p160 = scmp.eq.s32.totalorder %s16, 0
      %p161 = por %p159, %p160
      %p162 = scmp.le.s32.totalorder 1, %s10
      %p163 = scmp.lt.s32.totalorder %s10, 5
      %p164 = pnand %p162, %p163
      %p165 = pneg %p164
      // Predicated region
      $region9: #{mobilenetv2_forward.1} parent=5 // pred_check
        _
      $region10: #{mobilenetv2_forward.1} parent=5 // pred_check_branch
        %167 = sbr.rel (%p164) target = $region12
      $region11: #{mobilenetv2_forward.1} parent=5 // pred_region
        %s168 = ssub.s32 %s10, 1
      $region12: #{mobilenetv2_forward.1} parent=5 // pred_fallthru
        _
      %p169 = scmp.lt.s32.totalorder %s10, 4
      // Predicated region
      $region13: #{mobilenetv2_forward.1} parent=5 // pred_check
        %p170 = pneg %p169
      $region14: #{mobilenetv2_forward.1} parent=5 // pred_check_branch
        %172 = sbr.rel (%p170) target = $region16
      $region15: #{mobilenetv2_forward.1} parent=5 // pred_region
        // Predicated region
        $region17: #{mobilenetv2_forward.1} parent=15 // pred_check
          %p173 = pneg %p42
        $region18: #{mobilenetv2_forward.1} parent=15 // pred_check_branch
          %175 = sbr.rel (%p173) target = $region20
        $region19: #{mobilenetv2_forward.1} parent=15 // pred_region
          %s176 = smul.u32 4, %s18
          %p177 = scmp.lt.s32.totalorder %s176, 7
          %s178 = scalar_select %p177, %s176, 7
          %s179 = smul.addr %s178, 4
          %s180 = scalar_lea.vmem %s0, %s179
          %s181 = smul.u32 4, %s18
        $region20: #{mobilenetv2_forward.1} parent=15 // pred_fallthru
          _
        // Predicated region
        $region21: #{mobilenetv2_forward.1} parent=15 // pred_check
          %p182 = pneg %p70
        $region22: #{mobilenetv2_forward.1} parent=15 // pred_check_branch
          %184 = sbr.rel (%p182) target = $region24
        $region23: #{mobilenetv2_forward.1} parent=15 // pred_region
          %s185 = sand.u32 %s60, 1
          %s186 = sand.u32 %s60, 1
          %s187 = smul.addr %s186, 1024
          %s188 = scalar_lea.vmem [#allocation3], %s187
          %s189 = smul.u32 64, %s18
          %s190 = smul.u32 4, %s17
          %s191 = smul.addr %s189, 8
          %s192 = sadd.s32 %s190, %s191
          %s193 = smul.addr %s192, 4
          %s194 = scalar_lea.vmem %s1, %s193
          // Predicated region
          $region25: #{mobilenetv2_forward.1} parent=23 // pred_check
            _
          $region26: #{mobilenetv2_forward.1} parent=23 // pred_check_branch
            %196 = sbr.rel (0) target = $region28
          $region27: #{mobilenetv2_forward.1} parent=23 // pred_region
            // Predicated region
            $region29: #{mobilenetv2_forward.1} parent=27 // pred_check
              _
            $region30: #{mobilenetv2_forward.1} parent=27 // pred_check_branch
              %198 = sbr.rel (0) target = $region32
            $region31: #{mobilenetv2_forward.1} parent=27 // pred_region
              loop: start=0, step=1, limit=1
              $region33: #{mobilenetv2_forward.1} parent=31 // loop_pre_header
                _
              $region34: #{mobilenetv2_forward.1} parent=31 // loop_header
                %s200 = sphi 0, %s204
                %p201 = scmp.ge.s32.totalorder %s200, 1
                %s205 = sphi %s194, %s194
                %s206 = sphi %s188, %s188
              $region35: #{mobilenetv2_forward.1} parent=31 // loop_header_branch
                %203 = sbr.rel (%p201) target = $region39
              $region36: #{mobilenetv2_forward.1} parent=31 // loop_body
                %v207 = vld [vmem:[%s205] sm:$0xff]
                %208 = vst [vmem:[%s206] sm:$0xff] %v207
                %v209 = vld [vmem:[%s205 + $0x8] sm:$0xff]
                %210 = vst [vmem:[%s206 + $0x8] sm:$0xff] %v209
                %v211 = vld [vmem:[%s205 + $0x20] sm:$0xff]
                %212 = vst [vmem:[%s206 + $0x10] sm:$0xff] %v211
                %v213 = vld [vmem:[%s205 + $0x28] sm:$0xff]
                %214 = vst [vmem:[%s206 + $0x18] sm:$0xff] %v213
                %v215 = vld [vmem:[%s205 + $0x40] sm:$0xff]
                %216 = vst [vmem:[%s206 + $0x20] sm:$0xff] %v215
                %v217 = vld [vmem:[%s205 + $0x48] sm:$0xff]
                %218 = vst [vmem:[%s206 + $0x28] sm:$0xff] %v217
                %v219 = vld [vmem:[%s205 + $0x60] sm:$0xff]
                %220 = vst [vmem:[%s206 + $0x30] sm:$0xff] %v219
                %v221 = vld [vmem:[%s205 + $0x68] sm:$0xff]
                %222 = vst [vmem:[%s206 + $0x38] sm:$0xff] %v221
                %v223 = vld [vmem:[%s205 + $0x80] sm:$0xff]
                %224 = vst [vmem:[%s206 + $0x40] sm:$0xff] %v223
                %v225 = vld [vmem:[%s205 + $0x88] sm:$0xff]
                %226 = vst [vmem:[%s206 + $0x48] sm:$0xff] %v225
                %v227 = vld [vmem:[%s205 + $0xa0] sm:$0xff]
                %228 = vst [vmem:[%s206 + $0x50] sm:$0xff] %v227
                %v229 = vld [vmem:[%s205 + $0xa8] sm:$0xff]
                %230 = vst [vmem:[%s206 + $0x58] sm:$0xff] %v229
                %v231 = vld [vmem:[%s205 + $0xc0] sm:$0xff]
                %232 = vst [vmem:[%s206 + $0x60] sm:$0xff] %v231
                %v233 = vld [vmem:[%s205 + $0xc8] sm:$0xff]
                %234 = vst [vmem:[%s206 + $0x68] sm:$0xff] %v233
                %v235 = vld [vmem:[%s205 + $0xe0] sm:$0xff]
                %236 = vst [vmem:[%s206 + $0x70] sm:$0xff] %v235
                %v237 = vld [vmem:[%s205 + $0xe8] sm:$0xff]
                %238 = vst [vmem:[%s206 + $0x78] sm:$0xff] %v237
                %v239 = vld [vmem:[%s205 + $0x100] sm:$0xff]
                %240 = vst [vmem:[%s206 + $0x80] sm:$0xff] %v239
                %v241 = vld [vmem:[%s205 + $0x108] sm:$0xff]
                %242 = vst [vmem:[%s206 + $0x88] sm:$0xff] %v241
                %v243 = vld [vmem:[%s205 + $0x120] sm:$0xff]
                %244 = vst [vmem:[%s206 + $0x90] sm:$0xff] %v243
                %v245 = vld [vmem:[%s205 + $0x128] sm:$0xff]
                %246 = vst [vmem:[%s206 + $0x98] sm:$0xff] %v245
                %v247 = vld [vmem:[%s205 + $0x140] sm:$0xff]
                %248 = vst [vmem:[%s206 + $0xa0] sm:$0xff] %v247
                %v249 = vld [vmem:[%s205 + $0x148] sm:$0xff]
                %250 = vst [vmem:[%s206 + $0xa8] sm:$0xff] %v249
                %v251 = vld [vmem:[%s205 + $0x160] sm:$0xff]
                %252 = vst [vmem:[%s206 + $0xb0] sm:$0xff] %v251
                %v253 = vld [vmem:[%s205 + $0x168] sm:$0xff]
                %254 = vst [vmem:[%s206 + $0xb8] sm:$0xff] %v253
                %v255 = vld [vmem:[%s205 + $0x180] sm:$0xff]
                %256 = vst [vmem:[%s206 + $0xc0] sm:$0xff] %v255
                %v257 = vld [vmem:[%s205 + $0x188] sm:$0xff]
                %258 = vst [vmem:[%s206 + $0xc8] sm:$0xff] %v257
                %v259 = vld [vmem:[%s205 + $0x1a0] sm:$0xff]
                %260 = vst [vmem:[%s206 + $0xd0] sm:$0xff] %v259
                %v261 = vld [vmem:[%s205 + $0x1a8] sm:$0xff]
                %262 = vst [vmem:[%s206 + $0xd8] sm:$0xff] %v261
                %v263 = vld [vmem:[%s205 + $0x1c0] sm:$0xff]
                %264 = vst [vmem:[%s206 + $0xe0] sm:$0xff] %v263
                %v265 = vld [vmem:[%s205 + $0x1c8] sm:$0xff]
                %266 = vst [vmem:[%s206 + $0xe8] sm:$0xff] %v265
                %v267 = vld [vmem:[%s205 + $0x1e0] sm:$0xff]
                %268 = vst [vmem:[%s206 + $0xf0] sm:$0xff] %v267
                %v269 = vld [vmem:[%s205 + $0x1e8] sm:$0xff]
                %270 = vst [vmem:[%s206 + $0xf8] sm:$0xff] %v269
                %v271 = vld [vmem:[%s205 + $0x200] sm:$0xff]
                %272 = vst [vmem:[%s206 + $0x100] sm:$0xff] %v271
                %v273 = vld [vmem:[%s205 + $0x208] sm:$0xff]
                %274 = vst [vmem:[%s206 + $0x108] sm:$0xff] %v273
                %v275 = vld [vmem:[%s205 + $0x220] sm:$0xff]
                %276 = vst [vmem:[%s206 + $0x110] sm:$0xff] %v275
                %v277 = vld [vmem:[%s205 + $0x228] sm:$0xff]
                %278 = vst [vmem:[%s206 + $0x118] sm:$0xff] %v277
                %v279 = vld [vmem:[%s205 + $0x240] sm:$0xff]
                %280 = vst [vmem:[%s206 + $0x120] sm:$0xff] %v279
                %v281 = vld [vmem:[%s205 + $0x248] sm:$0xff]
                %282 = vst [vmem:[%s206 + $0x128] sm:$0xff] %v281
                %v283 = vld [vmem:[%s205 + $0x260] sm:$0xff]
                %284 = vst [vmem:[%s206 + $0x130] sm:$0xff] %v283
                %v285 = vld [vmem:[%s205 + $0x268] sm:$0xff]
                %286 = vst [vmem:[%s206 + $0x138] sm:$0xff] %v285
                %v287 = vld [vmem:[%s205 + $0x280] sm:$0xff]
                %288 = vst [vmem:[%s206 + $0x140] sm:$0xff] %v287
                %v289 = vld [vmem:[%s205 + $0x288] sm:$0xff]
                %290 = vst [vmem:[%s206 + $0x148] sm:$0xff] %v289
                %v291 = vld [vmem:[%s205 + $0x2a0] sm:$0xff]
                %292 = vst [vmem:[%s206 + $0x150] sm:$0xff] %v291
                %v293 = vld [vmem:[%s205 + $0x2a8] sm:$0xff]
                %294 = vst [vmem:[%s206 + $0x158] sm:$0xff] %v293
                %v295 = vld [vmem:[%s205 + $0x2c0] sm:$0xff]
                %296 = vst [vmem:[%s206 + $0x160] sm:$0xff] %v295
                %v297 = vld [vmem:[%s205 + $0x2c8] sm:$0xff]
                %298 = vst [vmem:[%s206 + $0x168] sm:$0xff] %v297
                %v299 = vld [vmem:[%s205 + $0x2e0] sm:$0xff]
                %300 = vst [vmem:[%s206 + $0x170] sm:$0xff] %v299
                %v301 = vld [vmem:[%s205 + $0x2e8] sm:$0xff]
                %302 = vst [vmem:[%s206 + $0x178] sm:$0xff] %v301
                %v303 = vld [vmem:[%s205 + $0x300] sm:$0xff]
                %304 = vst [vmem:[%s206 + $0x180] sm:$0xff] %v303
                %v305 = vld [vmem:[%s205 + $0x308] sm:$0xff]
                %306 = vst [vmem:[%s206 + $0x188] sm:$0xff] %v305
                %v307 = vld [vmem:[%s205 + $0x320] sm:$0xff]
                %308 = vst [vmem:[%s206 + $0x190] sm:$0xff] %v307
                %v309 = vld [vmem:[%s205 + $0x328] sm:$0xff]
                %310 = vst [vmem:[%s206 + $0x198] sm:$0xff] %v309
                %v311 = vld [vmem:[%s205 + $0x340] sm:$0xff]
                %312 = vst [vmem:[%s206 + $0x1a0] sm:$0xff] %v311
                %v313 = vld [vmem:[%s205 + $0x348] sm:$0xff]
                %314 = vst [vmem:[%s206 + $0x1a8] sm:$0xff] %v313
                %v315 = vld [vmem:[%s205 + $0x360] sm:$0xff]
                %316 = vst [vmem:[%s206 + $0x1b0] sm:$0xff] %v315
                %v317 = vld [vmem:[%s205 + $0x368] sm:$0xff]
                %318 = vst [vmem:[%s206 + $0x1b8] sm:$0xff] %v317
                %v319 = vld [vmem:[%s205 + $0x380] sm:$0xff]
                %320 = vst [vmem:[%s206 + $0x1c0] sm:$0xff] %v319
                %v321 = vld [vmem:[%s205 + $0x388] sm:$0xff]
                %322 = vst [vmem:[%s206 + $0x1c8] sm:$0xff] %v321
                %v323 = vld [vmem:[%s205 + $0x3a0] sm:$0xff]
                %324 = vst [vmem:[%s206 + $0x1d0] sm:$0xff] %v323
                %v325 = vld [vmem:[%s205 + $0x3a8] sm:$0xff]
                %326 = vst [vmem:[%s206 + $0x1d8] sm:$0xff] %v325
                %v327 = vld [vmem:[%s205 + $0x3c0] sm:$0xff]
                %328 = vst [vmem:[%s206 + $0x1e0] sm:$0xff] %v327
                %v329 = vld [vmem:[%s205 + $0x3c8] sm:$0xff]
                %330 = vst [vmem:[%s206 + $0x1e8] sm:$0xff] %v329
                %v331 = vld [vmem:[%s205 + $0x3e0] sm:$0xff]
                %332 = vst [vmem:[%s206 + $0x1f0] sm:$0xff] %v331
                %v333 = vld [vmem:[%s205 + $0x3e8] sm:$0xff]
                %334 = vst [vmem:[%s206 + $0x1f8] sm:$0xff] %v333
                %v335 = vld [vmem:[%s205 + $0x400] sm:$0xff]
                %336 = vst [vmem:[%s206 + $0x200] sm:$0xff] %v335
                %v337 = vld [vmem:[%s205 + $0x408] sm:$0xff]
                %338 = vst [vmem:[%s206 + $0x208] sm:$0xff] %v337
                %v339 = vld [vmem:[%s205 + $0x420] sm:$0xff]
                %340 = vst [vmem:[%s206 + $0x210] sm:$0xff] %v339
                %v341 = vld [vmem:[%s205 + $0x428] sm:$0xff]
                %342 = vst [vmem:[%s206 + $0x218] sm:$0xff] %v341
                %v343 = vld [vmem:[%s205 + $0x440] sm:$0xff]
                %344 = vst [vmem:[%s206 + $0x220] sm:$0xff] %v343
                %v345 = vld [vmem:[%s205 + $0x448] sm:$0xff]
                %346 = vst [vmem:[%s206 + $0x228] sm:$0xff] %v345
                %v347 = vld [vmem:[%s205 + $0x460] sm:$0xff]
                %348 = vst [vmem:[%s206 + $0x230] sm:$0xff] %v347
                %v349 = vld [vmem:[%s205 + $0x468] sm:$0xff]
                %350 = vst [vmem:[%s206 + $0x238] sm:$0xff] %v349
                %v351 = vld [vmem:[%s205 + $0x480] sm:$0xff]
                %352 = vst [vmem:[%s206 + $0x240] sm:$0xff] %v351
                %v353 = vld [vmem:[%s205 + $0x488] sm:$0xff]
                %354 = vst [vmem:[%s206 + $0x248] sm:$0xff] %v353
                %v355 = vld [vmem:[%s205 + $0x4a0] sm:$0xff]
                %356 = vst [vmem:[%s206 + $0x250] sm:$0xff] %v355
                %v357 = vld [vmem:[%s205 + $0x4a8] sm:$0xff]
                %358 = vst [vmem:[%s206 + $0x258] sm:$0xff] %v357
                %v359 = vld [vmem:[%s205 + $0x4c0] sm:$0xff]
                %360 = vst [vmem:[%s206 + $0x260] sm:$0xff] %v359
                %v361 = vld [vmem:[%s205 + $0x4c8] sm:$0xff]
                %362 = vst [vmem:[%s206 + $0x268] sm:$0xff] %v361
                %v363 = vld [vmem:[%s205 + $0x4e0] sm:$0xff]
                %364 = vst [vmem:[%s206 + $0x270] sm:$0xff] %v363
                %v365 = vld [vmem:[%s205 + $0x4e8] sm:$0xff]
                %366 = vst [vmem:[%s206 + $0x278] sm:$0xff] %v365
                %v367 = vld [vmem:[%s205 + $0x500] sm:$0xff]
                %368 = vst [vmem:[%s206 + $0x280] sm:$0xff] %v367
                %v369 = vld [vmem:[%s205 + $0x508] sm:$0xff]
                %370 = vst [vmem:[%s206 + $0x288] sm:$0xff] %v369
                %v371 = vld [vmem:[%s205 + $0x520] sm:$0xff]
                %372 = vst [vmem:[%s206 + $0x290] sm:$0xff] %v371
                %v373 = vld [vmem:[%s205 + $0x528] sm:$0xff]
                %374 = vst [vmem:[%s206 + $0x298] sm:$0xff] %v373
                %v375 = vld [vmem:[%s205 + $0x540] sm:$0xff]
                %376 = vst [vmem:[%s206 + $0x2a0] sm:$0xff] %v375
                %v377 = vld [vmem:[%s205 + $0x548] sm:$0xff]
                %378 = vst [vmem:[%s206 + $0x2a8] sm:$0xff] %v377
                %v379 = vld [vmem:[%s205 + $0x560] sm:$0xff]
                %380 = vst [vmem:[%s206 + $0x2b0] sm:$0xff] %v379
                %v381 = vld [vmem:[%s205 + $0x568] sm:$0xff]
                %382 = vst [vmem:[%s206 + $0x2b8] sm:$0xff] %v381
                %v383 = vld [vmem:[%s205 + $0x580] sm:$0xff]
                %384 = vst [vmem:[%s206 + $0x2c0] sm:$0xff] %v383
                %v385 = vld [vmem:[%s205 + $0x588] sm:$0xff]
                %386 = vst [vmem:[%s206 + $0x2c8] sm:$0xff] %v385
                %v387 = vld [vmem:[%s205 + $0x5a0] sm:$0xff]
                %388 = vst [vmem:[%s206 + $0x2d0] sm:$0xff] %v387
                %v389 = vld [vmem:[%s205 + $0x5a8] sm:$0xff]
                %390 = vst [vmem:[%s206 + $0x2d8] sm:$0xff] %v389
                %v391 = vld [vmem:[%s205 + $0x5c0] sm:$0xff]
                %392 = vst [vmem:[%s206 + $0x2e0] sm:$0xff] %v391
                %v393 = vld [vmem:[%s205 + $0x5c8] sm:$0xff]
                %394 = vst [vmem:[%s206 + $0x2e8] sm:$0xff] %v393
                %v395 = vld [vmem:[%s205 + $0x5e0] sm:$0xff]
                %396 = vst [vmem:[%s206 + $0x2f0] sm:$0xff] %v395
                %v397 = vld [vmem:[%s205 + $0x5e8] sm:$0xff]
                %398 = vst [vmem:[%s206 + $0x2f8] sm:$0xff] %v397
                %v399 = vld [vmem:[%s205 + $0x600] sm:$0xff]
                %400 = vst [vmem:[%s206 + $0x300] sm:$0xff] %v399
                %v401 = vld [vmem:[%s205 + $0x608] sm:$0xff]
                %402 = vst [vmem:[%s206 + $0x308] sm:$0xff] %v401
                %v403 = vld [vmem:[%s205 + $0x620] sm:$0xff]
                %404 = vst [vmem:[%s206 + $0x310] sm:$0xff] %v403
                %v405 = vld [vmem:[%s205 + $0x628] sm:$0xff]
                %406 = vst [vmem:[%s206 + $0x318] sm:$0xff] %v405
                %v407 = vld [vmem:[%s205 + $0x640] sm:$0xff]
                %408 = vst [vmem:[%s206 + $0x320] sm:$0xff] %v407
                %v409 = vld [vmem:[%s205 + $0x648] sm:$0xff]
                %410 = vst [vmem:[%s206 + $0x328] sm:$0xff] %v409
                %v411 = vld [vmem:[%s205 + $0x660] sm:$0xff]
                %412 = vst [vmem:[%s206 + $0x330] sm:$0xff] %v411
                %v413 = vld [vmem:[%s205 + $0x668] sm:$0xff]
                %414 = vst [vmem:[%s206 + $0x338] sm:$0xff] %v413
                %v415 = vld [vmem:[%s205 + $0x680] sm:$0xff]
                %416 = vst [vmem:[%s206 + $0x340] sm:$0xff] %v415
                %v417 = vld [vmem:[%s205 + $0x688] sm:$0xff]
                %418 = vst [vmem:[%s206 + $0x348] sm:$0xff] %v417
                %v419 = vld [vmem:[%s205 + $0x6a0] sm:$0xff]
                %420 = vst [vmem:[%s206 + $0x350] sm:$0xff] %v419
                %v421 = vld [vmem:[%s205 + $0x6a8] sm:$0xff]
                %422 = vst [vmem:[%s206 + $0x358] sm:$0xff] %v421
                %v423 = vld [vmem:[%s205 + $0x6c0] sm:$0xff]
                %424 = vst [vmem:[%s206 + $0x360] sm:$0xff] %v423
                %v425 = vld [vmem:[%s205 + $0x6c8] sm:$0xff]
                %426 = vst [vmem:[%s206 + $0x368] sm:$0xff] %v425
                %v427 = vld [vmem:[%s205 + $0x6e0] sm:$0xff]
                %428 = vst [vmem:[%s206 + $0x370] sm:$0xff] %v427
                %v429 = vld [vmem:[%s205 + $0x6e8] sm:$0xff]
                %430 = vst [vmem:[%s206 + $0x378] sm:$0xff] %v429
                %v431 = vld [vmem:[%s205 + $0x700] sm:$0xff]
                %432 = vst [vmem:[%s206 + $0x380] sm:$0xff] %v431
                %v433 = vld [vmem:[%s205 + $0x708] sm:$0xff]
                %434 = vst [vmem:[%s206 + $0x388] sm:$0xff] %v433
                %v435 = vld [vmem:[%s205 + $0x720] sm:$0xff]
                %436 = vst [vmem:[%s206 + $0x390] sm:$0xff] %v435
                %v437 = vld [vmem:[%s205 + $0x728] sm:$0xff]
                %438 = vst [vmem:[%s206 + $0x398] sm:$0xff] %v437
                %v439 = vld [vmem:[%s205 + $0x740] sm:$0xff]
                %440 = vst [vmem:[%s206 + $0x3a0] sm:$0xff] %v439
                %v441 = vld [vmem:[%s205 + $0x748] sm:$0xff]
                %442 = vst [vmem:[%s206 + $0x3a8] sm:$0xff] %v441
                %v443 = vld [vmem:[%s205 + $0x760] sm:$0xff]
                %444 = vst [vmem:[%s206 + $0x3b0] sm:$0xff] %v443
                %v445 = vld [vmem:[%s205 + $0x768] sm:$0xff]
                %446 = vst [vmem:[%s206 + $0x3b8] sm:$0xff] %v445
                %v447 = vld [vmem:[%s205 + $0x780] sm:$0xff]
                %448 = vst [vmem:[%s206 + $0x3c0] sm:$0xff] %v447
                %v449 = vld [vmem:[%s205 + $0x788] sm:$0xff]
                %450 = vst [vmem:[%s206 + $0x3c8] sm:$0xff] %v449
                %v451 = vld [vmem:[%s205 + $0x7a0] sm:$0xff]
                %452 = vst [vmem:[%s206 + $0x3d0] sm:$0xff] %v451
                %v453 = vld [vmem:[%s205 + $0x7a8] sm:$0xff]
                %454 = vst [vmem:[%s206 + $0x3d8] sm:$0xff] %v453
                %v455 = vld [vmem:[%s205 + $0x7c0] sm:$0xff]
                %456 = vst [vmem:[%s206 + $0x3e0] sm:$0xff] %v455
                %v457 = vld [vmem:[%s205 + $0x7c8] sm:$0xff]
                %458 = vst [vmem:[%s206 + $0x3e8] sm:$0xff] %v457
                %v459 = vld [vmem:[%s205 + $0x7e0] sm:$0xff]
                %460 = vst [vmem:[%s206 + $0x3f0] sm:$0xff] %v459
                %v461 = vld [vmem:[%s205 + $0x7e8] sm:$0xff]
                %462 = vst [vmem:[%s206 + $0x3f8] sm:$0xff] %v461
              $region37: #{mobilenetv2_forward.1} parent=31 // loop_footer
                %s204 = sadd.s32 1, %s200
              $region38: #{mobilenetv2_forward.1} parent=31 // loop_footer_branch
                %199 = sbr.rel target = $region34
              $region39: #{mobilenetv2_forward.1} parent=31 // loop_exit
                _
            $region32: #{mobilenetv2_forward.1} parent=27 // pred_fallthru
              _
            // Predicated region
            $region40: #{mobilenetv2_forward.1} parent=27 // pred_check
              _
            $region41: #{mobilenetv2_forward.1} parent=27 // pred_check_branch
              %464 = sbr.rel target = $region43
            $region42: #{mobilenetv2_forward.1} parent=27 // pred_region
              _
            $region43: #{mobilenetv2_forward.1} parent=27 // pred_fallthru
              _
          $region28: #{mobilenetv2_forward.1} parent=23 // pred_fallthru
            _
          %465 = vnop
        $region24: #{mobilenetv2_forward.1} parent=15 // pred_fallthru
          _
        // Predicated region
        $region44: #{mobilenetv2_forward.1} parent=15 // pred_check
          %p466 = pneg %p96
        $region45: #{mobilenetv2_forward.1} parent=15 // pred_check_branch
          %468 = sbr.rel (%p466) target = $region47
        $region46: #{mobilenetv2_forward.1} parent=15 // pred_region
          %s469 = smul.u32 4, %s17
          %p470 = scmp.lt.s32.totalorder %s469, 7
          %s471 = scalar_select %p470, %s469, 7
          %s472 = scalar_lea.vmem %s2, %s471
          %s473 = smul.u32 4, %s17
        $region47: #{mobilenetv2_forward.1} parent=15 // pred_fallthru
          _
        // Predicated region
        $region48: #{mobilenetv2_forward.1} parent=15 // pred_check
          %p474 = pneg %p122
        $region49: #{mobilenetv2_forward.1} parent=15 // pred_check_branch
          %476 = sbr.rel (%p474) target = $region51
        $region50: #{mobilenetv2_forward.1} parent=15 // pred_region
          %s477 = smul.u32 64, %s17
          %p478 = scmp.lt.s32.totalorder %s477, 127
          %s479 = scalar_select %p478, %s477, 127
          %s480 = smul.addr %s479, 8
          %s481 = scalar_lea.vmem %s3, %s480
          %s482 = smul.u32 64, %s17
        $region51: #{mobilenetv2_forward.1} parent=15 // pred_fallthru
          _
      $region16: #{mobilenetv2_forward.1} parent=5 // pred_fallthru
        _
      %p483 = scmp.le.s32.totalorder 1, %s10
      %p484 = scmp.lt.s32.totalorder %s10, 5
      %p485 = pnand %p483, %p484
      %p486 = pneg %p485
      // Predicated region
      $region52: #{mobilenetv2_forward.1} parent=5 // pred_check
        _
      $region53: #{mobilenetv2_forward.1} parent=5 // pred_check_branch
        %488 = sbr.rel (%p485) target = $region55
      $region54: #{mobilenetv2_forward.1} parent=5 // pred_region
        %s489 = ssub.s32 %s10, 1
        %s490 = sand.u32 %s63, 1
        %s491 = sand.u32 %s63, 1
        %s492 = smul.addr %s491, 1024
        %s493 = scalar_lea.vmem [#allocation3], %s492
        // Predicated region
        $region56: #{mobilenetv2_forward.1} parent=54 // pred_check
          %p494 = pneg %p76
        $region57: #{mobilenetv2_forward.1} parent=54 // pred_check_branch
          %496 = sbr.rel (%p494) target = $region59
        $region58: #{mobilenetv2_forward.1} parent=54 // pred_region
          _
        $region59: #{mobilenetv2_forward.1} parent=54 // pred_fallthru
          _
        %s497 = smul.u32 4, %s20
        %p498 = scmp.lt.s32.totalorder %s497, 7
        %s499 = scalar_select %p498, %s497, 7
        %s500 = smul.addr %s499, 4
        %s501 = scalar_lea.vmem %s0, %s500
        %p502 = pneg %p48
        %p503 = pneg %p45
        %s504 = sand.u32 %s63, 1
        %s505 = sand.u32 %s63, 1
        %s506 = smul.addr %s505, 1024
        %s507 = scalar_lea.vmem [#allocation3], %s506
        %p508 = pneg %p76
        %p509 = pneg %p73
        %s510 = smul.u32 4, %s19
        %p511 = scmp.lt.s32.totalorder %s510, 7
        %s512 = scalar_select %p511, %s510, 7
        %s513 = scalar_lea.vmem %s2, %s512
        %p514 = pneg %p102
        %p515 = pneg %p99
        %s516 = smul.u32 64, %s19
        %p517 = scmp.lt.s32.totalorder %s516, 127
        %s518 = scalar_select %p517, %s516, 127
        %s519 = smul.addr %s518, 8
        %s520 = scalar_lea.vmem %s3, %s519
        %p521 = pneg %p128
        %p522 = pneg %p125
        %p523 = pneg %p154
        %p524 = pneg %p151
        %p525 = scmp.lt.s32.totalorder %s19, 1
        %s526 = scalar_select %p525, %s19, 1
        %s527 = smul.addr %s526, 8
        %s528 = scalar_lea.vmem %s4, %s527
        %s529 = smul.u32 4, %s20
        %p530 = scmp.lt.s32.totalorder %s529, 7
        %s531 = scalar_select %p530, %s529, 7
        %s532 = smul.addr %s531, 4
        %s533 = scalar_lea.vmem %s0, %s532
        %s534 = smul.u32 4, %s20
        %s535 = smul.u32 64, %s20
        %s536 = smul.u32 4, %s19
        %s537 = smul.u32 4, %s19
        %p538 = scmp.lt.s32.totalorder %s537, 7
        %s539 = scalar_select %p538, %s537, 7
        %s540 = scalar_lea.vmem %s2, %s539
        %s541 = smul.u32 4, %s19
        %s542 = smul.u32 64, %s19
        %p543 = scmp.lt.s32.totalorder %s542, 127
        %s544 = scalar_select %p543, %s542, 127
        %s545 = smul.addr %s544, 8
        %s546 = scalar_lea.vmem %s3, %s545
        %s547 = smul.u32 64, %s19
        %p548 = scmp.lt.s32.totalorder %s19, 1
        %s549 = scalar_select %p548, %s19, 1
        %s550 = smul.addr %s549, 8
        %s551 = scalar_lea.vmem %s4, %s550
        %p552 = scmp.eq.s32.totalorder %s20, 0
        // Predicated region
        $region60: #{mobilenetv2_forward.1} parent=54 // pred_check
          %p553 = pneg %p552
        $region61: #{mobilenetv2_forward.1} parent=54 // pred_check_branch
          %555 = sbr.rel (%p553) target = $region63
        $region62: #{mobilenetv2_forward.1} parent=54 // pred_region
          %556 = vst [vmem:[#allocation2] sm:$0xff] 0.0
          %557 = vst [vmem:[#allocation2 + $0x8] sm:$0xff] 0.0
          %558 = vst [vmem:[#allocation2 + $0x10] sm:$0xff] 0.0
          %559 = vst [vmem:[#allocation2 + $0x18] sm:$0xff] 0.0
        $region63: #{mobilenetv2_forward.1} parent=54 // pred_fallthru
          _
        %v560 = vld [vmem:[#allocation2] sm:$0xff]
        %v561 = vld [vmem:[#allocation2 + $0x8] sm:$0xff]
        %v562 = vld [vmem:[#allocation2 + $0x10] sm:$0xff]
        %v563 = vld [vmem:[#allocation2 + $0x18] sm:$0xff]
        %v564 = vld [vmem:[%s533] sm:$0xff]
        %v565 = vld [vmem:[%s533 + $0x8] sm:$0xff]
        %v566 = vld [vmem:[%s493] sm:$0xff]
        %v567 = vld [vmem:[%s493 + $0x8] sm:$0xff]
        %v568 = vld [vmem:[%s493 + $0x10] sm:$0xff]
        %v569 = vld [vmem:[%s493 + $0x18] sm:$0xff]
        %v570 = vld [vmem:[%s493 + $0x20] sm:$0xff]
        %v571 = vld [vmem:[%s493 + $0x28] sm:$0xff]
        %v572 = vld [vmem:[%s493 + $0x30] sm:$0xff]
        %v573 = vld [vmem:[%s493 + $0x38] sm:$0xff]
        %v574 = vld [vmem:[%s493 + $0x40] sm:$0xff]
        %v575 = vld [vmem:[%s493 + $0x48] sm:$0xff]
        %v576 = vld [vmem:[%s493 + $0x50] sm:$0xff]
        %v577 = vld [vmem:[%s493 + $0x58] sm:$0xff]
        %v578 = vld [vmem:[%s493 + $0x60] sm:$0xff]
        %v579 = vld [vmem:[%s493 + $0x68] sm:$0xff]
        %v580 = vld [vmem:[%s493 + $0x70] sm:$0xff]
        %v581 = vld [vmem:[%s493 + $0x78] sm:$0xff]
        %v582 = vld [vmem:[%s493 + $0x80] sm:$0xff]
        %v583 = vld [vmem:[%s493 + $0x88] sm:$0xff]
        %v584 = vld [vmem:[%s493 + $0x90] sm:$0xff]
        %v585 = vld [vmem:[%s493 + $0x98] sm:$0xff]
        %v586 = vld [vmem:[%s493 + $0xa0] sm:$0xff]
        %v587 = vld [vmem:[%s493 + $0xa8] sm:$0xff]
        %v588 = vld [vmem:[%s493 + $0xb0] sm:$0xff]
        %v589 = vld [vmem:[%s493 + $0xb8] sm:$0xff]
        %v590 = vld [vmem:[%s493 + $0xc0] sm:$0xff]
        %v591 = vld [vmem:[%s493 + $0xc8] sm:$0xff]
        %v592 = vld [vmem:[%s493 + $0xd0] sm:$0xff]
        %v593 = vld [vmem:[%s493 + $0xd8] sm:$0xff]
        %v594 = vld [vmem:[%s493 + $0xe0] sm:$0xff]
        %v595 = vld [vmem:[%s493 + $0xe8] sm:$0xff]
        %v596 = vld [vmem:[%s493 + $0xf0] sm:$0xff]
        %v597 = vld [vmem:[%s493 + $0xf8] sm:$0xff]
        %v598 = vld [vmem:[%s493 + $0x100] sm:$0xff]
        %v599 = vld [vmem:[%s493 + $0x108] sm:$0xff]
        %v600 = vld [vmem:[%s493 + $0x110] sm:$0xff]
        %v601 = vld [vmem:[%s493 + $0x118] sm:$0xff]
        %v602 = vld [vmem:[%s493 + $0x120] sm:$0xff]
        %v603 = vld [vmem:[%s493 + $0x128] sm:$0xff]
        %v604 = vld [vmem:[%s493 + $0x130] sm:$0xff]
        %v605 = vld [vmem:[%s493 + $0x138] sm:$0xff]
        %v606 = vld [vmem:[%s493 + $0x140] sm:$0xff]
        %v607 = vld [vmem:[%s493 + $0x148] sm:$0xff]
        %v608 = vld [vmem:[%s493 + $0x150] sm:$0xff]
        %v609 = vld [vmem:[%s493 + $0x158] sm:$0xff]
        %v610 = vld [vmem:[%s493 + $0x160] sm:$0xff]
        %v611 = vld [vmem:[%s493 + $0x168] sm:$0xff]
        %v612 = vld [vmem:[%s493 + $0x170] sm:$0xff]
        %v613 = vld [vmem:[%s493 + $0x178] sm:$0xff]
        %v614 = vld [vmem:[%s493 + $0x180] sm:$0xff]
        %v615 = vld [vmem:[%s493 + $0x188] sm:$0xff]
        %v616 = vld [vmem:[%s493 + $0x190] sm:$0xff]
        %v617 = vld [vmem:[%s493 + $0x198] sm:$0xff]
        %v618 = vld [vmem:[%s493 + $0x1a0] sm:$0xff]
        %v619 = vld [vmem:[%s493 + $0x1a8] sm:$0xff]
        %v620 = vld [vmem:[%s493 + $0x1b0] sm:$0xff]
        %v621 = vld [vmem:[%s493 + $0x1b8] sm:$0xff]
        %v622 = vld [vmem:[%s493 + $0x1c0] sm:$0xff]
        %v623 = vld [vmem:[%s493 + $0x1c8] sm:$0xff]
        %v624 = vld [vmem:[%s493 + $0x1d0] sm:$0xff]
        %v625 = vld [vmem:[%s493 + $0x1d8] sm:$0xff]
        %v626 = vld [vmem:[%s493 + $0x1e0] sm:$0xff]
        %v627 = vld [vmem:[%s493 + $0x1e8] sm:$0xff]
        %v628 = vld [vmem:[%s493 + $0x1f0] sm:$0xff]
        %v629 = vld [vmem:[%s493 + $0x1f8] sm:$0xff]
        %v630 = vld [vmem:[%s493 + $0x200] sm:$0xff]
        %v631 = vld [vmem:[%s493 + $0x208] sm:$0xff]
        %v632 = vld [vmem:[%s493 + $0x210] sm:$0xff]
        %v633 = vld [vmem:[%s493 + $0x218] sm:$0xff]
        %v634 = vld [vmem:[%s493 + $0x220] sm:$0xff]
        %v635 = vld [vmem:[%s493 + $0x228] sm:$0xff]
        %v636 = vld [vmem:[%s493 + $0x230] sm:$0xff]
        %v637 = vld [vmem:[%s493 + $0x238] sm:$0xff]
        %v638 = vld [vmem:[%s493 + $0x240] sm:$0xff]
        %v639 = vld [vmem:[%s493 + $0x248] sm:$0xff]
        %v640 = vld [vmem:[%s493 + $0x250] sm:$0xff]
        %v641 = vld [vmem:[%s493 + $0x258] sm:$0xff]
        %v642 = vld [vmem:[%s493 + $0x260] sm:$0xff]
        %v643 = vld [vmem:[%s493 + $0x268] sm:$0xff]
        %v644 = vld [vmem:[%s493 + $0x270] sm:$0xff]
        %v645 = vld [vmem:[%s493 + $0x278] sm:$0xff]
        %v646 = vld [vmem:[%s493 + $0x280] sm:$0xff]
        %v647 = vld [vmem:[%s493 + $0x288] sm:$0xff]
        %v648 = vld [vmem:[%s493 + $0x290] sm:$0xff]
        %v649 = vld [vmem:[%s493 + $0x298] sm:$0xff]
        %v650 = vld [vmem:[%s493 + $0x2a0] sm:$0xff]
        %v651 = vld [vmem:[%s493 + $0x2a8] sm:$0xff]
        %v652 = vld [vmem:[%s493 + $0x2b0] sm:$0xff]
        %v653 = vld [vmem:[%s493 + $0x2b8] sm:$0xff]
        %v654 = vld [vmem:[%s493 + $0x2c0] sm:$0xff]
        %v655 = vld [vmem:[%s493 + $0x2c8] sm:$0xff]
        %v656 = vld [vmem:[%s493 + $0x2d0] sm:$0xff]
        %v657 = vld [vmem:[%s493 + $0x2d8] sm:$0xff]
        %v658 = vld [vmem:[%s493 + $0x2e0] sm:$0xff]
        %v659 = vld [vmem:[%s493 + $0x2e8] sm:$0xff]
        %v660 = vld [vmem:[%s493 + $0x2f0] sm:$0xff]
        %v661 = vld [vmem:[%s493 + $0x2f8] sm:$0xff]
        %v662 = vld [vmem:[%s493 + $0x300] sm:$0xff]
        %v663 = vld [vmem:[%s493 + $0x308] sm:$0xff]
        %v664 = vld [vmem:[%s493 + $0x310] sm:$0xff]
        %v665 = vld [vmem:[%s493 + $0x318] sm:$0xff]
        %v666 = vld [vmem:[%s493 + $0x320] sm:$0xff]
        %v667 = vld [vmem:[%s493 + $0x328] sm:$0xff]
        %v668 = vld [vmem:[%s493 + $0x330] sm:$0xff]
        %v669 = vld [vmem:[%s493 + $0x338] sm:$0xff]
        %v670 = vld [vmem:[%s493 + $0x340] sm:$0xff]
        %v671 = vld [vmem:[%s493 + $0x348] sm:$0xff]
        %v672 = vld [vmem:[%s493 + $0x350] sm:$0xff]
        %v673 = vld [vmem:[%s493 + $0x358] sm:$0xff]
        %v674 = vld [vmem:[%s493 + $0x360] sm:$0xff]
        %v675 = vld [vmem:[%s493 + $0x368] sm:$0xff]
        %v676 = vld [vmem:[%s493 + $0x370] sm:$0xff]
        %v677 = vld [vmem:[%s493 + $0x378] sm:$0xff]
        %v678 = vld [vmem:[%s493 + $0x380] sm:$0xff]
        %v679 = vld [vmem:[%s493 + $0x388] sm:$0xff]
        %v680 = vld [vmem:[%s493 + $0x390] sm:$0xff]
        %v681 = vld [vmem:[%s493 + $0x398] sm:$0xff]
        %v682 = vld [vmem:[%s493 + $0x3a0] sm:$0xff]
        %v683 = vld [vmem:[%s493 + $0x3a8] sm:$0xff]
        %v684 = vld [vmem:[%s493 + $0x3b0] sm:$0xff]
        %v685 = vld [vmem:[%s493 + $0x3b8] sm:$0xff]
        %v686 = vld [vmem:[%s493 + $0x3c0] sm:$0xff]
        %v687 = vld [vmem:[%s493 + $0x3c8] sm:$0xff]
        %v688 = vld [vmem:[%s493 + $0x3d0] sm:$0xff]
        %v689 = vld [vmem:[%s493 + $0x3d8] sm:$0xff]
        %v690 = vld [vmem:[%s493 + $0x3e0] sm:$0xff]
        %v691 = vld [vmem:[%s493 + $0x3e8] sm:$0xff]
        %v692 = vld [vmem:[%s493 + $0x3f0] sm:$0xff]
        %v693 = vld [vmem:[%s493 + $0x3f8] sm:$0xff]
        %v696 = vunpack.c.l.b16 %v564
        %v697 = vunpack.c.h.b16 %v564
        %v698 = vunpack.c.l.b16 %v565
        %v699 = vunpack.c.h.b16 %v565
        %v700 = vpack.c.b16 %v696, %v696
        %v701 = vpack.c.b16 %v697, %v697
        %v702 = vpack.c.b16 %v698, %v698
        %v703 = vpack.c.b16 %v699, %v699
        %v836 = vunpack.c.l.b16 %v566
        %v837 = vunpack.c.h.b16 %v566
        %v838 = vunpack.c.l.b16 %v567
        %v839 = vunpack.c.h.b16 %v567
        %v840 = vunpack.c.l.b16 %v568
        %v841 = vunpack.c.h.b16 %v568
        %v842 = vunpack.c.l.b16 %v569
        %v843 = vunpack.c.h.b16 %v569
        %v844 = vunpack.c.l.b16 %v570
        %v845 = vunpack.c.h.b16 %v570
        %v846 = vunpack.c.l.b16 %v571
        %v847 = vunpack.c.h.b16 %v571
        %v848 = vunpack.c.l.b16 %v572
        %v849 = vunpack.c.h.b16 %v572
        %v850 = vunpack.c.l.b16 %v573
        %v851 = vunpack.c.h.b16 %v573
        %v852 = vunpack.c.l.b16 %v574
        %v853 = vunpack.c.h.b16 %v574
        %v854 = vunpack.c.l.b16 %v575
        %v855 = vunpack.c.h.b16 %v575
        %v856 = vunpack.c.l.b16 %v576
        %v857 = vunpack.c.h.b16 %v576
        %v858 = vunpack.c.l.b16 %v577
        %v859 = vunpack.c.h.b16 %v577
        %v860 = vunpack.c.l.b16 %v578
        %v861 = vunpack.c.h.b16 %v578
        %v862 = vunpack.c.l.b16 %v579
        %v863 = vunpack.c.h.b16 %v579
        %v864 = vunpack.c.l.b16 %v580
        %v865 = vunpack.c.h.b16 %v580
        %v866 = vunpack.c.l.b16 %v581
        %v867 = vunpack.c.h.b16 %v581
        %v868 = vunpack.c.l.b16 %v582
        %v869 = vunpack.c.h.b16 %v582
        %v870 = vunpack.c.l.b16 %v583
        %v871 = vunpack.c.h.b16 %v583
        %v872 = vunpack.c.l.b16 %v584
        %v873 = vunpack.c.h.b16 %v584
        %v874 = vunpack.c.l.b16 %v585
        %v875 = vunpack.c.h.b16 %v585
        %v876 = vunpack.c.l.b16 %v586
        %v877 = vunpack.c.h.b16 %v586
        %v878 = vunpack.c.l.b16 %v587
        %v879 = vunpack.c.h.b16 %v587
        %v880 = vunpack.c.l.b16 %v588
        %v881 = vunpack.c.h.b16 %v588
        %v882 = vunpack.c.l.b16 %v589
        %v883 = vunpack.c.h.b16 %v589
        %v884 = vunpack.c.l.b16 %v590
        %v885 = vunpack.c.h.b16 %v590
        %v886 = vunpack.c.l.b16 %v591
        %v887 = vunpack.c.h.b16 %v591
        %v888 = vunpack.c.l.b16 %v592
        %v889 = vunpack.c.h.b16 %v592
        %v890 = vunpack.c.l.b16 %v593
        %v891 = vunpack.c.h.b16 %v593
        %v892 = vunpack.c.l.b16 %v594
        %v893 = vunpack.c.h.b16 %v594
        %v894 = vunpack.c.l.b16 %v595
        %v895 = vunpack.c.h.b16 %v595
        %v896 = vunpack.c.l.b16 %v596
        %v897 = vunpack.c.h.b16 %v596
        %v898 = vunpack.c.l.b16 %v597
        %v899 = vunpack.c.h.b16 %v597
        %v900 = vunpack.c.l.b16 %v598
        %v901 = vunpack.c.h.b16 %v598
        %v902 = vunpack.c.l.b16 %v599
        %v903 = vunpack.c.h.b16 %v599
        %v904 = vunpack.c.l.b16 %v600
        %v905 = vunpack.c.h.b16 %v600
        %v906 = vunpack.c.l.b16 %v601
        %v907 = vunpack.c.h.b16 %v601
        %v908 = vunpack.c.l.b16 %v602
        %v909 = vunpack.c.h.b16 %v602
        %v910 = vunpack.c.l.b16 %v603
        %v911 = vunpack.c.h.b16 %v603
        %v912 = vunpack.c.l.b16 %v604
        %v913 = vunpack.c.h.b16 %v604
        %v914 = vunpack.c.l.b16 %v605
        %v915 = vunpack.c.h.b16 %v605
        %v916 = vunpack.c.l.b16 %v606
        %v917 = vunpack.c.h.b16 %v606
        %v918 = vunpack.c.l.b16 %v607
        %v919 = vunpack.c.h.b16 %v607
        %v920 = vunpack.c.l.b16 %v608
        %v921 = vunpack.c.h.b16 %v608
        %v922 = vunpack.c.l.b16 %v609
        %v923 = vunpack.c.h.b16 %v609
        %v924 = vunpack.c.l.b16 %v610
        %v925 = vunpack.c.h.b16 %v610
        %v926 = vunpack.c.l.b16 %v611
        %v927 = vunpack.c.h.b16 %v611
        %v928 = vunpack.c.l.b16 %v612
        %v929 = vunpack.c.h.b16 %v612
        %v930 = vunpack.c.l.b16 %v613
        %v931 = vunpack.c.h.b16 %v613
        %v932 = vunpack.c.l.b16 %v614
        %v933 = vunpack.c.h.b16 %v614
        %v934 = vunpack.c.l.b16 %v615
        %v935 = vunpack.c.h.b16 %v615
        %v936 = vunpack.c.l.b16 %v616
        %v937 = vunpack.c.h.b16 %v616
        %v938 = vunpack.c.l.b16 %v617
        %v939 = vunpack.c.h.b16 %v617
        %v940 = vunpack.c.l.b16 %v618
        %v941 = vunpack.c.h.b16 %v618
        %v942 = vunpack.c.l.b16 %v619
        %v943 = vunpack.c.h.b16 %v619
        %v944 = vunpack.c.l.b16 %v620
        %v945 = vunpack.c.h.b16 %v620
        %v946 = vunpack.c.l.b16 %v621
        %v947 = vunpack.c.h.b16 %v621
        %v948 = vunpack.c.l.b16 %v622
        %v949 = vunpack.c.h.b16 %v622
        %v950 = vunpack.c.l.b16 %v623
        %v951 = vunpack.c.h.b16 %v623
        %v952 = vunpack.c.l.b16 %v624
        %v953 = vunpack.c.h.b16 %v624
        %v954 = vunpack.c.l.b16 %v625
        %v955 = vunpack.c.h.b16 %v625
        %v956 = vunpack.c.l.b16 %v626
        %v957 = vunpack.c.h.b16 %v626
        %v958 = vunpack.c.l.b16 %v627
        %v959 = vunpack.c.h.b16 %v627
        %v960 = vunpack.c.l.b16 %v628
        %v961 = vunpack.c.h.b16 %v628
        %v962 = vunpack.c.l.b16 %v629
        %v963 = vunpack.c.h.b16 %v629
        %v964 = vunpack.c.l.b16 %v630
        %v965 = vunpack.c.h.b16 %v630
        %v966 = vunpack.c.l.b16 %v631
        %v967 = vunpack.c.h.b16 %v631
        %v968 = vunpack.c.l.b16 %v632
        %v969 = vunpack.c.h.b16 %v632
        %v970 = vunpack.c.l.b16 %v633
        %v971 = vunpack.c.h.b16 %v633
        %v972 = vunpack.c.l.b16 %v634
        %v973 = vunpack.c.h.b16 %v634
        %v974 = vunpack.c.l.b16 %v635
        %v975 = vunpack.c.h.b16 %v635
        %v976 = vunpack.c.l.b16 %v636
        %v977 = vunpack.c.h.b16 %v636
        %v978 = vunpack.c.l.b16 %v637
        %v979 = vunpack.c.h.b16 %v637
        %v980 = vunpack.c.l.b16 %v638
        %v981 = vunpack.c.h.b16 %v638
        %v982 = vunpack.c.l.b16 %v639
        %v983 = vunpack.c.h.b16 %v639
        %v984 = vunpack.c.l.b16 %v640
        %v985 = vunpack.c.h.b16 %v640
        %v986 = vunpack.c.l.b16 %v641
        %v987 = vunpack.c.h.b16 %v641
        %v988 = vunpack.c.l.b16 %v642
        %v989 = vunpack.c.h.b16 %v642
        %v990 = vunpack.c.l.b16 %v643
        %v991 = vunpack.c.h.b16 %v643
        %v992 = vunpack.c.l.b16 %v644
        %v993 = vunpack.c.h.b16 %v644
        %v994 = vunpack.c.l.b16 %v645
        %v995 = vunpack.c.h.b16 %v645
        %v996 = vunpack.c.l.b16 %v646
        %v997 = vunpack.c.h.b16 %v646
        %v998 = vunpack.c.l.b16 %v647
        %v999 = vunpack.c.h.b16 %v647
        %v1000 = vunpack.c.l.b16 %v648
        %v1001 = vunpack.c.h.b16 %v648
        %v1002 = vunpack.c.l.b16 %v649
        %v1003 = vunpack.c.h.b16 %v649
        %v1004 = vunpack.c.l.b16 %v650
        %v1005 = vunpack.c.h.b16 %v650
        %v1006 = vunpack.c.l.b16 %v651
        %v1007 = vunpack.c.h.b16 %v651
        %v1008 = vunpack.c.l.b16 %v652
        %v1009 = vunpack.c.h.b16 %v652
        %v1010 = vunpack.c.l.b16 %v653
        %v1011 = vunpack.c.h.b16 %v653
        %v1012 = vunpack.c.l.b16 %v654
        %v1013 = vunpack.c.h.b16 %v654
        %v1014 = vunpack.c.l.b16 %v655
        %v1015 = vunpack.c.h.b16 %v655
        %v1016 = vunpack.c.l.b16 %v656
        %v1017 = vunpack.c.h.b16 %v656
        %v1018 = vunpack.c.l.b16 %v657
        %v1019 = vunpack.c.h.b16 %v657
        %v1020 = vunpack.c.l.b16 %v658
        %v1021 = vunpack.c.h.b16 %v658
        %v1022 = vunpack.c.l.b16 %v659
        %v1023 = vunpack.c.h.b16 %v659
        %v1024 = vunpack.c.l.b16 %v660
        %v1025 = vunpack.c.h.b16 %v660
        %v1026 = vunpack.c.l.b16 %v661
        %v1027 = vunpack.c.h.b16 %v661
        %v1028 = vunpack.c.l.b16 %v662
        %v1029 = vunpack.c.h.b16 %v662
        %v1030 = vunpack.c.l.b16 %v663
        %v1031 = vunpack.c.h.b16 %v663
        %v1032 = vunpack.c.l.b16 %v664
        %v1033 = vunpack.c.h.b16 %v664
        %v1034 = vunpack.c.l.b16 %v665
        %v1035 = vunpack.c.h.b16 %v665
        %v1036 = vunpack.c.l.b16 %v666
        %v1037 = vunpack.c.h.b16 %v666
        %v1038 = vunpack.c.l.b16 %v667
        %v1039 = vunpack.c.h.b16 %v667
        %v1040 = vunpack.c.l.b16 %v668
        %v1041 = vunpack.c.h.b16 %v668
        %v1042 = vunpack.c.l.b16 %v669
        %v1043 = vunpack.c.h.b16 %v669
        %v1044 = vunpack.c.l.b16 %v670
        %v1045 = vunpack.c.h.b16 %v670
        %v1046 = vunpack.c.l.b16 %v671
        %v1047 = vunpack.c.h.b16 %v671
        %v1048 = vunpack.c.l.b16 %v672
        %v1049 = vunpack.c.h.b16 %v672
        %v1050 = vunpack.c.l.b16 %v673
        %v1051 = vunpack.c.h.b16 %v673
        %v1052 = vunpack.c.l.b16 %v674
        %v1053 = vunpack.c.h.b16 %v674
        %v1054 = vunpack.c.l.b16 %v675
        %v1055 = vunpack.c.h.b16 %v675
        %v1056 = vunpack.c.l.b16 %v676
        %v1057 = vunpack.c.h.b16 %v676
        %v1058 = vunpack.c.l.b16 %v677
        %v1059 = vunpack.c.h.b16 %v677
        %v1060 = vunpack.c.l.b16 %v678
        %v1061 = vunpack.c.h.b16 %v678
        %v1062 = vunpack.c.l.b16 %v679
        %v1063 = vunpack.c.h.b16 %v679
        %v1064 = vunpack.c.l.b16 %v680
        %v1065 = vunpack.c.h.b16 %v680
        %v1066 = vunpack.c.l.b16 %v681
        %v1067 = vunpack.c.h.b16 %v681
        %v1068 = vunpack.c.l.b16 %v682
        %v1069 = vunpack.c.h.b16 %v682
        %v1070 = vunpack.c.l.b16 %v683
        %v1071 = vunpack.c.h.b16 %v683
        %v1072 = vunpack.c.l.b16 %v684
        %v1073 = vunpack.c.h.b16 %v684
        %v1074 = vunpack.c.l.b16 %v685
        %v1075 = vunpack.c.h.b16 %v685
        %v1076 = vunpack.c.l.b16 %v686
        %v1077 = vunpack.c.h.b16 %v686
        %v1078 = vunpack.c.l.b16 %v687
        %v1079 = vunpack.c.h.b16 %v687
        %v1080 = vunpack.c.l.b16 %v688
        %v1081 = vunpack.c.h.b16 %v688
        %v1082 = vunpack.c.l.b16 %v689
        %v1083 = vunpack.c.h.b16 %v689
        %v1084 = vunpack.c.l.b16 %v690
        %v1085 = vunpack.c.h.b16 %v690
        %v1086 = vunpack.c.l.b16 %v691
        %v1087 = vunpack.c.h.b16 %v691
        %v1088 = vunpack.c.l.b16 %v692
        %v1089 = vunpack.c.h.b16 %v692
        %v1090 = vunpack.c.l.b16 %v693
        %v1091 = vunpack.c.h.b16 %v693
        %v1092 = vpack.c.b16 %v840, %v836
        %v1093 = vpack.c.b16 %v841, %v837
        %v1094 = vpack.c.b16 %v842, %v838
        %v1095 = vpack.c.b16 %v843, %v839
        %v1096 = vpack.c.b16 %v848, %v844
        %v1097 = vpack.c.b16 %v849, %v845
        %v1098 = vpack.c.b16 %v850, %v846
        %v1099 = vpack.c.b16 %v851, %v847
        %v1100 = vpack.c.b16 %v856, %v852
        %v1101 = vpack.c.b16 %v857, %v853
        %v1102 = vpack.c.b16 %v858, %v854
        %v1103 = vpack.c.b16 %v859, %v855
        %v1104 = vpack.c.b16 %v864, %v860
        %v1105 = vpack.c.b16 %v865, %v861
        %v1106 = vpack.c.b16 %v866, %v862
        %v1107 = vpack.c.b16 %v867, %v863
        %v1108 = vpack.c.b16 %v872, %v868
        %v1109 = vpack.c.b16 %v873, %v869
        %v1110 = vpack.c.b16 %v874, %v870
        %v1111 = vpack.c.b16 %v875, %v871
        %v1112 = vpack.c.b16 %v880, %v876
        %v1113 = vpack.c.b16 %v881, %v877
        %v1114 = vpack.c.b16 %v882, %v878
        %v1115 = vpack.c.b16 %v883, %v879
        %v1116 = vpack.c.b16 %v888, %v884
        %v1117 = vpack.c.b16 %v889, %v885
        %v1118 = vpack.c.b16 %v890, %v886
        %v1119 = vpack.c.b16 %v891, %v887
        %v1120 = vpack.c.b16 %v896, %v892
        %v1121 = vpack.c.b16 %v897, %v893
        %v1122 = vpack.c.b16 %v898, %v894
        %v1123 = vpack.c.b16 %v899, %v895
        %v1124 = vpack.c.b16 %v904, %v900
        %v1125 = vpack.c.b16 %v905, %v901
        %v1126 = vpack.c.b16 %v906, %v902
        %v1127 = vpack.c.b16 %v907, %v903
        %v1128 = vpack.c.b16 %v912, %v908
        %v1129 = vpack.c.b16 %v913, %v909
        %v1130 = vpack.c.b16 %v914, %v910
        %v1131 = vpack.c.b16 %v915, %v911
        %v1132 = vpack.c.b16 %v920, %v916
        %v1133 = vpack.c.b16 %v921, %v917
        %v1134 = vpack.c.b16 %v922, %v918
        %v1135 = vpack.c.b16 %v923, %v919
        %v1136 = vpack.c.b16 %v928, %v924
        %v1137 = vpack.c.b16 %v929, %v925
        %v1138 = vpack.c.b16 %v930, %v926
        %v1139 = vpack.c.b16 %v931, %v927
        %v1140 = vpack.c.b16 %v936, %v932
        %v1141 = vpack.c.b16 %v937, %v933
        %v1142 = vpack.c.b16 %v938, %v934
        %v1143 = vpack.c.b16 %v939, %v935
        %v1144 = vpack.c.b16 %v944, %v940
        %v1145 = vpack.c.b16 %v945, %v941
        %v1146 = vpack.c.b16 %v946, %v942
        %v1147 = vpack.c.b16 %v947, %v943
        %v1148 = vpack.c.b16 %v952, %v948
        %v1149 = vpack.c.b16 %v953, %v949
        %v1150 = vpack.c.b16 %v954, %v950
        %v1151 = vpack.c.b16 %v955, %v951
        %v1152 = vpack.c.b16 %v960, %v956
        %v1153 = vpack.c.b16 %v961, %v957
        %v1154 = vpack.c.b16 %v962, %v958
        %v1155 = vpack.c.b16 %v963, %v959
        %v1156 = vpack.c.b16 %v968, %v964
        %v1157 = vpack.c.b16 %v969, %v965
        %v1158 = vpack.c.b16 %v970, %v966
        %v1159 = vpack.c.b16 %v971, %v967
        %v1160 = vpack.c.b16 %v976, %v972
        %v1161 = vpack.c.b16 %v977, %v973
        %v1162 = vpack.c.b16 %v978, %v974
        %v1163 = vpack.c.b16 %v979, %v975
        %v1164 = vpack.c.b16 %v984, %v980
        %v1165 = vpack.c.b16 %v985, %v981
        %v1166 = vpack.c.b16 %v986, %v982
        %v1167 = vpack.c.b16 %v987, %v983
        %v1168 = vpack.c.b16 %v992, %v988
        %v1169 = vpack.c.b16 %v993, %v989
        %v1170 = vpack.c.b16 %v994, %v990
        %v1171 = vpack.c.b16 %v995, %v991
        %v1172 = vpack.c.b16 %v1000, %v996
        %v1173 = vpack.c.b16 %v1001, %v997
        %v1174 = vpack.c.b16 %v1002, %v998
        %v1175 = vpack.c.b16 %v1003, %v999
        %v1176 = vpack.c.b16 %v1008, %v1004
        %v1177 = vpack.c.b16 %v1009, %v1005
        %v1178 = vpack.c.b16 %v1010, %v1006
        %v1179 = vpack.c.b16 %v1011, %v1007
        %v1180 = vpack.c.b16 %v1016, %v1012
        %v1181 = vpack.c.b16 %v1017, %v1013
        %v1182 = vpack.c.b16 %v1018, %v1014
        %v1183 = vpack.c.b16 %v1019, %v1015
        %v1184 = vpack.c.b16 %v1024, %v1020
        %v1185 = vpack.c.b16 %v1025, %v1021
        %v1186 = vpack.c.b16 %v1026, %v1022
        %v1187 = vpack.c.b16 %v1027, %v1023
        %v1188 = vpack.c.b16 %v1032, %v1028
        %v1189 = vpack.c.b16 %v1033, %v1029
        %v1190 = vpack.c.b16 %v1034, %v1030
        %v1191 = vpack.c.b16 %v1035, %v1031
        %v1192 = vpack.c.b16 %v1040, %v1036
        %v1193 = vpack.c.b16 %v1041, %v1037
        %v1194 = vpack.c.b16 %v1042, %v1038
        %v1195 = vpack.c.b16 %v1043, %v1039
        %v1196 = vpack.c.b16 %v1048, %v1044
        %v1197 = vpack.c.b16 %v1049, %v1045
        %v1198 = vpack.c.b16 %v1050, %v1046
        %v1199 = vpack.c.b16 %v1051, %v1047
        %v1200 = vpack.c.b16 %v1056, %v1052
        %v1201 = vpack.c.b16 %v1057, %v1053
        %v1202 = vpack.c.b16 %v1058, %v1054
        %v1203 = vpack.c.b16 %v1059, %v1055
        %v1204 = vpack.c.b16 %v1064, %v1060
        %v1205 = vpack.c.b16 %v1065, %v1061
        %v1206 = vpack.c.b16 %v1066, %v1062
        %v1207 = vpack.c.b16 %v1067, %v1063
        %v1208 = vpack.c.b16 %v1072, %v1068
        %v1209 = vpack.c.b16 %v1073, %v1069
        %v1210 = vpack.c.b16 %v1074, %v1070
        %v1211 = vpack.c.b16 %v1075, %v1071
        %v1212 = vpack.c.b16 %v1080, %v1076
        %v1213 = vpack.c.b16 %v1081, %v1077
        %v1214 = vpack.c.b16 %v1082, %v1078
        %v1215 = vpack.c.b16 %v1083, %v1079
        %v1216 = vpack.c.b16 %v1088, %v1084
        %v1217 = vpack.c.b16 %v1089, %v1085
        %v1218 = vpack.c.b16 %v1090, %v1086
        %v1219 = vpack.c.b16 %v1091, %v1087
        %1348 = vmatprep.subr.bf16.mxu0 %v1121
        %1349 = vmatpush1.bf16.msra.mxu0 %v1120
        %1350 = vmatprep.subr.bf16.mxu0 %v1117
        %1351 = vmatpush1.bf16.msra.mxu0 %v1116
        %1352 = vmatprep.subr.bf16.mxu0 %v1113
        %1353 = vmatpush1.bf16.msra.mxu0 %v1112
        %1354 = vmatprep.subr.bf16.mxu0 %v1109
        %1355 = vmatpush1.bf16.msra.mxu0 %v1108
        %1356 = vmatprep.subr.bf16.mxu0 %v1105
        %1357 = vmatpush1.bf16.msra.mxu0 %v1104
        %1358 = vmatprep.subr.bf16.mxu0 %v1101
        %1359 = vmatpush1.bf16.msra.mxu0 %v1100
        %1360 = vmatprep.subr.bf16.mxu0 %v1097
        %1361 = vmatpush1.bf16.msra.mxu0 %v1096
        %1362 = vmatprep.subr.bf16.mxu0 %v1093
        %1363 = vmatpush1.bf16.msra.mxu0 %v1092
        %1364 = vmatprep.subr.bf16.mxu0 %v1153
        %1365 = vmatpush2.bf16.msra.mxu0 %v1152
        %1366 = vmatprep.subr.bf16.mxu0 %v1149
        %1367 = vmatpush2.bf16.msra.mxu0 %v1148
        %1368 = vmatprep.subr.bf16.mxu0 %v1145
        %1369 = vmatpush2.bf16.msra.mxu0 %v1144
        %1370 = vmatprep.subr.bf16.mxu0 %v1141
        %1371 = vmatpush2.bf16.msra.mxu0 %v1140
        %1372 = vmatprep.subr.bf16.mxu0 %v1137
        %1373 = vmatpush2.bf16.msra.mxu0 %v1136
        %1374 = vmatprep.subr.bf16.mxu0 %v1133
        %1375 = vmatpush2.bf16.msra.mxu0 %v1132
        %1376 = vmatprep.subr.bf16.mxu0 %v1129
        %1377 = vmatpush2.bf16.msra.mxu0 %v1128
        %1378 = vmatprep.subr.bf16.mxu0 %v1125
        %1379 = vmatpush2.bf16.msra.mxu0 %v1124
        %1380 = vmatprep.mubr.bf16.mxu0 %v701
        %1381 = vmatmul.mubr.bf16.gmra.mxu0 %v700
        %v1382 = vpop.f32.mrf.mxu0
        %v1383 = vadd.f32 0.0, %v1382
        %v1384 = vpop.f32.mrf.mxu0
        %v1385 = vadd.f32 0.0, %v1384
        %v1386 = vpop.f32.mrf.mxu0
        %v1387 = vpop.f32.mrf.mxu0
        %1388 = vdwg.mxu0
        %1389 = vmatprep.subr.bf16.mxu0 %v1185
        %1390 = vmatpush1.bf16.msra.mxu0 %v1184
        %1391 = vmatprep.subr.bf16.mxu0 %v1181
        %1392 = vmatpush1.bf16.msra.mxu0 %v1180
        %1393 = vmatprep.subr.bf16.mxu0 %v1177
        %1394 = vmatpush1.bf16.msra.mxu0 %v1176
        %1395 = vmatprep.subr.bf16.mxu0 %v1173
        %1396 = vmatpush1.bf16.msra.mxu0 %v1172
        %1397 = vmatprep.subr.bf16.mxu0 %v1169
        %1398 = vmatpush1.bf16.msra.mxu0 %v1168
        %1399 = vmatprep.subr.bf16.mxu0 %v1165
        %1400 = vmatpush1.bf16.msra.mxu0 %v1164
        %1401 = vmatprep.subr.bf16.mxu0 %v1161
        %1402 = vmatpush1.bf16.msra.mxu0 %v1160
        %1403 = vmatprep.subr.bf16.mxu0 %v1157
        %1404 = vmatpush1.bf16.msra.mxu0 %v1156
        %1405 = vmatprep.subr.bf16.mxu0 %v1217
        %1406 = vmatpush2.bf16.msra.mxu0 %v1216
        %1407 = vmatprep.subr.bf16.mxu0 %v1213
        %1408 = vmatpush2.bf16.msra.mxu0 %v1212
        %1409 = vmatprep.subr.bf16.mxu0 %v1209
        %1410 = vmatpush2.bf16.msra.mxu0 %v1208
        %1411 = vmatprep.subr.bf16.mxu0 %v1205
        %1412 = vmatpush2.bf16.msra.mxu0 %v1204
        %1413 = vmatprep.subr.bf16.mxu0 %v1201
        %1414 = vmatpush2.bf16.msra.mxu0 %v1200
        %1415 = vmatprep.subr.bf16.mxu0 %v1197
        %1416 = vmatpush2.bf16.msra.mxu0 %v1196
        %1417 = vmatprep.subr.bf16.mxu0 %v1193
        %1418 = vmatpush2.bf16.msra.mxu0 %v1192
        %1419 = vmatprep.subr.bf16.mxu0 %v1189
        %1420 = vmatpush2.bf16.msra.mxu0 %v1188
        %1421 = vmatprep.mubr.bf16.mxu0 %v703
        %1422 = vmatmul.mubr.bf16.gmra.mxu0 %v702
        %v1423 = vpop.f32.mrf.mxu0
        %v1424 = vadd.f32 %v1383, %v1423
        %v1425 = vpop.f32.mrf.mxu0
        %v1426 = vadd.f32 %v1385, %v1425
        %v1427 = vpop.f32.mrf.mxu0
        %v1428 = vpop.f32.mrf.mxu0
        %1429 = vdwg.mxu0
        %1430 = vmatprep.subr.bf16.mxu0 %v1123
        %1431 = vmatpush1.bf16.msra.mxu0 %v1122
        %1432 = vmatprep.subr.bf16.mxu0 %v1119
        %1433 = vmatpush1.bf16.msra.mxu0 %v1118
        %1434 = vmatprep.subr.bf16.mxu0 %v1115
        %1435 = vmatpush1.bf16.msra.mxu0 %v1114
        %1436 = vmatprep.subr.bf16.mxu0 %v1111
        %1437 = vmatpush1.bf16.msra.mxu0 %v1110
        %1438 = vmatprep.subr.bf16.mxu0 %v1107
        %1439 = vmatpush1.bf16.msra.mxu0 %v1106
        %1440 = vmatprep.subr.bf16.mxu0 %v1103
        %1441 = vmatpush1.bf16.msra.mxu0 %v1102
        %1442 = vmatprep.subr.bf16.mxu0 %v1099
        %1443 = vmatpush1.bf16.msra.mxu0 %v1098
        %1444 = vmatprep.subr.bf16.mxu0 %v1095
        %1445 = vmatpush1.bf16.msra.mxu0 %v1094
        %1446 = vmatprep.subr.bf16.mxu0 %v1155
        %1447 = vmatpush2.bf16.msra.mxu0 %v1154
        %1448 = vmatprep.subr.bf16.mxu0 %v1151
        %1449 = vmatpush2.bf16.msra.mxu0 %v1150
        %1450 = vmatprep.subr.bf16.mxu0 %v1147
        %1451 = vmatpush2.bf16.msra.mxu0 %v1146
        %1452 = vmatprep.subr.bf16.mxu0 %v1143
        %1453 = vmatpush2.bf16.msra.mxu0 %v1142
        %1454 = vmatprep.subr.bf16.mxu0 %v1139
        %1455 = vmatpush2.bf16.msra.mxu0 %v1138
        %1456 = vmatprep.subr.bf16.mxu0 %v1135
        %1457 = vmatpush2.bf16.msra.mxu0 %v1134
        %1458 = vmatprep.subr.bf16.mxu0 %v1131
        %1459 = vmatpush2.bf16.msra.mxu0 %v1130
        %1460 = vmatprep.subr.bf16.mxu0 %v1127
        %1461 = vmatpush2.bf16.msra.mxu0 %v1126
        %1462 = vmatprep.mubr.bf16.mxu0 %v701
        %1463 = vmatmul.mubr.bf16.gmra.mxu0 %v700
        %v1464 = vpop.f32.mrf.mxu0
        %v1465 = vadd.f32 0.0, %v1464
        %v1466 = vpop.f32.mrf.mxu0
        %v1467 = vadd.f32 0.0, %v1466
        %v1468 = vpop.f32.mrf.mxu0
        %v1469 = vpop.f32.mrf.mxu0
        %1470 = vdwg.mxu0
        %1471 = vmatprep.subr.bf16.mxu0 %v1187
        %1472 = vmatpush1.bf16.msra.mxu0 %v1186
        %1473 = vmatprep.subr.bf16.mxu0 %v1183
        %1474 = vmatpush1.bf16.msra.mxu0 %v1182
        %1475 = vmatprep.subr.bf16.mxu0 %v1179
        %1476 = vmatpush1.bf16.msra.mxu0 %v1178
        %1477 = vmatprep.subr.bf16.mxu0 %v1175
        %1478 = vmatpush1.bf16.msra.mxu0 %v1174
        %1479 = vmatprep.subr.bf16.mxu0 %v1171
        %1480 = vmatpush1.bf16.msra.mxu0 %v1170
        %1481 = vmatprep.subr.bf16.mxu0 %v1167
        %1482 = vmatpush1.bf16.msra.mxu0 %v1166
        %1483 = vmatprep.subr.bf16.mxu0 %v1163
        %1484 = vmatpush1.bf16.msra.mxu0 %v1162
        %1485 = vmatprep.subr.bf16.mxu0 %v1159
        %1486 = vmatpush1.bf16.msra.mxu0 %v1158
        %1487 = vmatprep.subr.bf16.mxu0 %v1219
        %1488 = vmatpush2.bf16.msra.mxu0 %v1218
        %1489 = vmatprep.subr.bf16.mxu0 %v1215
        %1490 = vmatpush2.bf16.msra.mxu0 %v1214
        %1491 = vmatprep.subr.bf16.mxu0 %v1211
        %1492 = vmatpush2.bf16.msra.mxu0 %v1210
        %1493 = vmatprep.subr.bf16.mxu0 %v1207
        %1494 = vmatpush2.bf16.msra.mxu0 %v1206
        %1495 = vmatprep.subr.bf16.mxu0 %v1203
        %1496 = vmatpush2.bf16.msra.mxu0 %v1202
        %1497 = vmatprep.subr.bf16.mxu0 %v1199
        %1498 = vmatpush2.bf16.msra.mxu0 %v1198
        %1499 = vmatprep.subr.bf16.mxu0 %v1195
        %1500 = vmatpush2.bf16.msra.mxu0 %v1194
        %1501 = vmatprep.subr.bf16.mxu0 %v1191
        %1502 = vmatpush2.bf16.msra.mxu0 %v1190
        %1503 = vmatprep.mubr.bf16.mxu0 %v703
        %1504 = vmatmul.mubr.bf16.gmra.mxu0 %v702
        %v1505 = vpop.f32.mrf.mxu0
        %v1506 = vadd.f32 %v1465, %v1505
        %v1507 = vpop.f32.mrf.mxu0
        %v1508 = vadd.f32 %v1467, %v1507
        %v1509 = vpop.f32.mrf.mxu0
        %v1510 = vpop.f32.mrf.mxu0
        %1511 = vdwg.mxu0
        %v1512 = vadd.f32 %v560, %v1424
        %v1513 = vadd.f32 %v561, %v1426
        %v1514 = vadd.f32 %v562, %v1506
        %v1515 = vadd.f32 %v563, %v1508
        %1516 = vst [vmem:[#allocation2] sm:$0xff] %v1512
        %1517 = vst [vmem:[#allocation2 + $0x8] sm:$0xff] %v1513
        %1518 = vst [vmem:[#allocation2 + $0x10] sm:$0xff] %v1514
        %1519 = vst [vmem:[#allocation2 + $0x18] sm:$0xff] %v1515
        %p1520 = scmp.eq.s32.totalorder %s20, 1
        // Predicated region
        $region64: #{mobilenetv2_forward.1} parent=54 // pred_check
          %p1521 = pneg %p1520
        $region65: #{mobilenetv2_forward.1} parent=54 // pred_check_branch
          %1523 = sbr.rel (%p1521) target = $region67
        $region66: #{mobilenetv2_forward.1} parent=54 // pred_region
          %v1524 = vld [vmem:[#allocation2] sm:$0xff]
          %v1525 = vld [vmem:[#allocation2 + $0x8] sm:$0xff]
          %v1526 = vld [vmem:[#allocation2 + $0x10] sm:$0xff]
          %v1527 = vld [vmem:[#allocation2 + $0x18] sm:$0xff]
          %v1528 = vld [vmem:[%s540] sm:$0xf]
          %v1530 = vlaneseq
          %v1531 = vshrl.u32 %v1530, 7
          %v1532 = vsub.s32 0, %v1531
          %v1533 = vrot.slane %v1528, %v1532
          %v1534 = vlaneseq
          %v1535 = vshrl.u32 %v1534, 7
          %v1536 = vsub.s32 1, %v1535
          %v1537 = vrot.slane %v1528, %v1536
          %v1538 = vlaneseq
          %v1539 = vshrl.u32 %v1538, 7
          %v1540 = vsub.s32 2, %v1539
          %v1541 = vrot.slane %v1528, %v1540
          %v1542 = vlaneseq
          %v1543 = vshrl.u32 %v1542, 7
          %v1544 = vsub.s32 3, %v1543
          %v1545 = vrot.slane %v1528, %v1544
          %v1550 = vadd.f32 %v1524, %v1533
          %v1551 = vadd.f32 %v1525, %v1537
          %v1552 = vadd.f32 %v1526, %v1541
          %v1553 = vadd.f32 %v1527, %v1545
          %v1554 = vld [vmem:[%s546] sm:$0xff]
          %v1555 = vld [vmem:[%s546 + $0x8] sm:$0xff]
          %v1556 = vld [vmem:[%s546 + $0x10] sm:$0xff]
          %v1557 = vld [vmem:[%s546 + $0x18] sm:$0xff]
          %v1558 = vld [vmem:[%s546 + $0x20] sm:$0xff]
          %v1559 = vld [vmem:[%s546 + $0x28] sm:$0xff]
          %v1560 = vld [vmem:[%s546 + $0x30] sm:$0xff]
          %v1561 = vld [vmem:[%s546 + $0x38] sm:$0xff]
          %v1562 = vld [vmem:[%s546 + $0x40] sm:$0xff]
          %v1563 = vld [vmem:[%s546 + $0x48] sm:$0xff]
          %v1564 = vld [vmem:[%s546 + $0x50] sm:$0xff]
          %v1565 = vld [vmem:[%s546 + $0x58] sm:$0xff]
          %v1566 = vld [vmem:[%s546 + $0x60] sm:$0xff]
          %v1567 = vld [vmem:[%s546 + $0x68] sm:$0xff]
          %v1568 = vld [vmem:[%s546 + $0x70] sm:$0xff]
          %v1569 = vld [vmem:[%s546 + $0x78] sm:$0xff]
          %v1570 = vld [vmem:[%s546 + $0x80] sm:$0xff]
          %v1571 = vld [vmem:[%s546 + $0x88] sm:$0xff]
          %v1572 = vld [vmem:[%s546 + $0x90] sm:$0xff]
          %v1573 = vld [vmem:[%s546 + $0x98] sm:$0xff]
          %v1574 = vld [vmem:[%s546 + $0xa0] sm:$0xff]
          %v1575 = vld [vmem:[%s546 + $0xa8] sm:$0xff]
          %v1576 = vld [vmem:[%s546 + $0xb0] sm:$0xff]
          %v1577 = vld [vmem:[%s546 + $0xb8] sm:$0xff]
          %v1578 = vld [vmem:[%s546 + $0xc0] sm:$0xff]
          %v1579 = vld [vmem:[%s546 + $0xc8] sm:$0xff]
          %v1580 = vld [vmem:[%s546 + $0xd0] sm:$0xff]
          %v1581 = vld [vmem:[%s546 + $0xd8] sm:$0xff]
          %v1582 = vld [vmem:[%s546 + $0xe0] sm:$0xff]
          %v1583 = vld [vmem:[%s546 + $0xe8] sm:$0xff]
          %v1584 = vld [vmem:[%s546 + $0xf0] sm:$0xff]
          %v1585 = vld [vmem:[%s546 + $0xf8] sm:$0xff]
          %v1586 = vld [vmem:[%s546 + $0x100] sm:$0xff]
          %v1587 = vld [vmem:[%s546 + $0x108] sm:$0xff]
          %v1588 = vld [vmem:[%s546 + $0x110] sm:$0xff]
          %v1589 = vld [vmem:[%s546 + $0x118] sm:$0xff]
          %v1590 = vld [vmem:[%s546 + $0x120] sm:$0xff]
          %v1591 = vld [vmem:[%s546 + $0x128] sm:$0xff]
          %v1592 = vld [vmem:[%s546 + $0x130] sm:$0xff]
          %v1593 = vld [vmem:[%s546 + $0x138] sm:$0xff]
          %v1594 = vld [vmem:[%s546 + $0x140] sm:$0xff]
          %v1595 = vld [vmem:[%s546 + $0x148] sm:$0xff]
          %v1596 = vld [vmem:[%s546 + $0x150] sm:$0xff]
          %v1597 = vld [vmem:[%s546 + $0x158] sm:$0xff]
          %v1598 = vld [vmem:[%s546 + $0x160] sm:$0xff]
          %v1599 = vld [vmem:[%s546 + $0x168] sm:$0xff]
          %v1600 = vld [vmem:[%s546 + $0x170] sm:$0xff]
          %v1601 = vld [vmem:[%s546 + $0x178] sm:$0xff]
          %v1602 = vld [vmem:[%s546 + $0x180] sm:$0xff]
          %v1603 = vld [vmem:[%s546 + $0x188] sm:$0xff]
          %v1604 = vld [vmem:[%s546 + $0x190] sm:$0xff]
          %v1605 = vld [vmem:[%s546 + $0x198] sm:$0xff]
          %v1606 = vld [vmem:[%s546 + $0x1a0] sm:$0xff]
          %v1607 = vld [vmem:[%s546 + $0x1a8] sm:$0xff]
          %v1608 = vld [vmem:[%s546 + $0x1b0] sm:$0xff]
          %v1609 = vld [vmem:[%s546 + $0x1b8] sm:$0xff]
          %v1610 = vld [vmem:[%s546 + $0x1c0] sm:$0xff]
          %v1611 = vld [vmem:[%s546 + $0x1c8] sm:$0xff]
          %v1612 = vld [vmem:[%s546 + $0x1d0] sm:$0xff]
          %v1613 = vld [vmem:[%s546 + $0x1d8] sm:$0xff]
          %v1614 = vld [vmem:[%s546 + $0x1e0] sm:$0xff]
          %v1615 = vld [vmem:[%s546 + $0x1e8] sm:$0xff]
          %v1616 = vld [vmem:[%s546 + $0x1f0] sm:$0xff]
          %v1617 = vld [vmem:[%s546 + $0x1f8] sm:$0xff]
          %1618 = vmatprep.subr.mxu0 0.0
          %1619 = vmatpush1.msra.mxu0 %v1569
          %1620 = vmatprep.subr.mxu0 0.0
          %1621 = vmatpush1.msra.mxu0 %v1568
          %1622 = vmatprep.subr.mxu0 0.0
          %1623 = vmatpush1.msra.mxu0 %v1567
          %1624 = vmatprep.subr.mxu0 0.0
          %1625 = vmatpush1.msra.mxu0 %v1566
          %1626 = vmatprep.subr.mxu0 0.0
          %1627 = vmatpush1.msra.mxu0 %v1565
          %1628 = vmatprep.subr.mxu0 0.0
          %1629 = vmatpush1.msra.mxu0 %v1564
          %1630 = vmatprep.subr.mxu0 0.0
          %1631 = vmatpush1.msra.mxu0 %v1563
          %1632 = vmatprep.subr.mxu0 0.0
          %1633 = vmatpush1.msra.mxu0 %v1562
          %1634 = vmatprep.subr.mxu0 0.0
          %1635 = vmatpush1.msra.mxu0 %v1561
          %1636 = vmatprep.subr.mxu0 0.0
          %1637 = vmatpush1.msra.mxu0 %v1560
          %1638 = vmatprep.subr.mxu0 0.0
          %1639 = vmatpush1.msra.mxu0 %v1559
          %1640 = vmatprep.subr.mxu0 0.0
          %1641 = vmatpush1.msra.mxu0 %v1558
          %1642 = vmatprep.subr.mxu0 0.0
          %1643 = vmatpush1.msra.mxu0 %v1557
          %1644 = vmatprep.subr.mxu0 0.0
          %1645 = vmatpush1.msra.mxu0 %v1556
          %1646 = vmatprep.subr.mxu0 0.0
          %1647 = vmatpush1.msra.mxu0 %v1555
          %1648 = vmatprep.subr.mxu0 0.0
          %1649 = vmatpush1.msra.mxu0 %v1554
          %1650 = vmatprep.subr.mxu0 0.0
          %1651 = vmatpush2.msra.mxu0 %v1585
          %1652 = vmatprep.subr.mxu0 0.0
          %1653 = vmatpush2.msra.mxu0 %v1584
          %1654 = vmatprep.subr.mxu0 0.0
          %1655 = vmatpush2.msra.mxu0 %v1583
          %1656 = vmatprep.subr.mxu0 0.0
          %1657 = vmatpush2.msra.mxu0 %v1582
          %1658 = vmatprep.subr.mxu0 0.0
          %1659 = vmatpush2.msra.mxu0 %v1581
          %1660 = vmatprep.subr.mxu0 0.0
          %1661 = vmatpush2.msra.mxu0 %v1580
          %1662 = vmatprep.subr.mxu0 0.0
          %1663 = vmatpush2.msra.mxu0 %v1579
          %1664 = vmatprep.subr.mxu0 0.0
          %1665 = vmatpush2.msra.mxu0 %v1578
          %1666 = vmatprep.subr.mxu0 0.0
          %1667 = vmatpush2.msra.mxu0 %v1577
          %1668 = vmatprep.subr.mxu0 0.0
          %1669 = vmatpush2.msra.mxu0 %v1576
          %1670 = vmatprep.subr.mxu0 0.0
          %1671 = vmatpush2.msra.mxu0 %v1575
          %1672 = vmatprep.subr.mxu0 0.0
          %1673 = vmatpush2.msra.mxu0 %v1574
          %1674 = vmatprep.subr.mxu0 0.0
          %1675 = vmatpush2.msra.mxu0 %v1573
          %1676 = vmatprep.subr.mxu0 0.0
          %1677 = vmatpush2.msra.mxu0 %v1572
          %1678 = vmatprep.subr.mxu0 0.0
          %1679 = vmatpush2.msra.mxu0 %v1571
          %1680 = vmatprep.subr.mxu0 0.0
          %1681 = vmatpush2.msra.mxu0 %v1570
          %1682 = vmatprep.mubr.f32.mxu0 %v1551
          %1683 = vmatmul.mubr.f32.gmra.mxu0 %v1550
          %v1684 = vpop.f32.mrf.mxu0
          %v1685 = vadd.f32 0.0, %v1684
          %v1686 = vpop.f32.mrf.mxu0
          %1687 = vdwg.mxu0
          %1688 = vmatprep.subr.mxu0 0.0
          %1689 = vmatpush1.msra.mxu0 %v1601
          %1690 = vmatprep.subr.mxu0 0.0
          %1691 = vmatpush1.msra.mxu0 %v1600
          %1692 = vmatprep.subr.mxu0 0.0
          %1693 = vmatpush1.msra.mxu0 %v1599
          %1694 = vmatprep.subr.mxu0 0.0
          %1695 = vmatpush1.msra.mxu0 %v1598
          %1696 = vmatprep.subr.mxu0 0.0
          %1697 = vmatpush1.msra.mxu0 %v1597
          %1698 = vmatprep.subr.mxu0 0.0
          %1699 = vmatpush1.msra.mxu0 %v1596
          %1700 = vmatprep.subr.mxu0 0.0
          %1701 = vmatpush1.msra.mxu0 %v1595
          %1702 = vmatprep.subr.mxu0 0.0
          %1703 = vmatpush1.msra.mxu0 %v1594
          %1704 = vmatprep.subr.mxu0 0.0
          %1705 = vmatpush1.msra.mxu0 %v1593
          %1706 = vmatprep.subr.mxu0 0.0
          %1707 = vmatpush1.msra.mxu0 %v1592
          %1708 = vmatprep.subr.mxu0 0.0
          %1709 = vmatpush1.msra.mxu0 %v1591
          %1710 = vmatprep.subr.mxu0 0.0
          %1711 = vmatpush1.msra.mxu0 %v1590
          %1712 = vmatprep.subr.mxu0 0.0
          %1713 = vmatpush1.msra.mxu0 %v1589
          %1714 = vmatprep.subr.mxu0 0.0
          %1715 = vmatpush1.msra.mxu0 %v1588
          %1716 = vmatprep.subr.mxu0 0.0
          %1717 = vmatpush1.msra.mxu0 %v1587
          %1718 = vmatprep.subr.mxu0 0.0
          %1719 = vmatpush1.msra.mxu0 %v1586
          %1720 = vmatprep.subr.mxu0 0.0
          %1721 = vmatpush2.msra.mxu0 %v1617
          %1722 = vmatprep.subr.mxu0 0.0
          %1723 = vmatpush2.msra.mxu0 %v1616
          %1724 = vmatprep.subr.mxu0 0.0
          %1725 = vmatpush2.msra.mxu0 %v1615
          %1726 = vmatprep.subr.mxu0 0.0
          %1727 = vmatpush2.msra.mxu0 %v1614
          %1728 = vmatprep.subr.mxu0 0.0
          %1729 = vmatpush2.msra.mxu0 %v1613
          %1730 = vmatprep.subr.mxu0 0.0
          %1731 = vmatpush2.msra.mxu0 %v1612
          %1732 = vmatprep.subr.mxu0 0.0
          %1733 = vmatpush2.msra.mxu0 %v1611
          %1734 = vmatprep.subr.mxu0 0.0
          %1735 = vmatpush2.msra.mxu0 %v1610
          %1736 = vmatprep.subr.mxu0 0.0
          %1737 = vmatpush2.msra.mxu0 %v1609
          %1738 = vmatprep.subr.mxu0 0.0
          %1739 = vmatpush2.msra.mxu0 %v1608
          %1740 = vmatprep.subr.mxu0 0.0
          %1741 = vmatpush2.msra.mxu0 %v1607
          %1742 = vmatprep.subr.mxu0 0.0
          %1743 = vmatpush2.msra.mxu0 %v1606
          %1744 = vmatprep.subr.mxu0 0.0
          %1745 = vmatpush2.msra.mxu0 %v1605
          %1746 = vmatprep.subr.mxu0 0.0
          %1747 = vmatpush2.msra.mxu0 %v1604
          %1748 = vmatprep.subr.mxu0 0.0
          %1749 = vmatpush2.msra.mxu0 %v1603
          %1750 = vmatprep.subr.mxu0 0.0
          %1751 = vmatpush2.msra.mxu0 %v1602
          %1752 = vmatprep.mubr.f32.mxu0 %v1553
          %1753 = vmatmul.mubr.f32.gmra.mxu0 %v1552
          %v1754 = vpop.f32.mrf.mxu0
          %v1755 = vadd.f32 %v1685, %v1754
          %v1756 = vpop.f32.mrf.mxu0
          %1757 = vdwg.mxu0
          %1758 = vst [vmem:[%s551] sm:$0xff] %v1755
        $region67: #{mobilenetv2_forward.1} parent=54 // pred_fallthru
          _
        %p1759 = scmp.lt.s32.totalorder %s19, 1
        %s1760 = scalar_select %p1759, %s19, 1
        %s1761 = smul.addr %s1760, 8
        %s1762 = scalar_lea.vmem %s4, %s1761
        // Predicated region
        $region68: #{mobilenetv2_forward.1} parent=54 // pred_check
          %p1763 = pneg %p151
        $region69: #{mobilenetv2_forward.1} parent=54 // pred_check_branch
          %1765 = sbr.rel (%p1763) target = $region71
        $region70: #{mobilenetv2_forward.1} parent=54 // pred_region
          _
        $region71: #{mobilenetv2_forward.1} parent=54 // pred_fallthru
          _
      $region55: #{mobilenetv2_forward.1} parent=5 // pred_fallthru
        _
      %p1766 = scmp.le.s32.totalorder 2, %s10
      // Predicated region
      $region72: #{mobilenetv2_forward.1} parent=5 // pred_check
        %p1767 = pneg %p1766
      $region73: #{mobilenetv2_forward.1} parent=5 // pred_check_branch
        %1769 = sbr.rel (%p1767) target = $region75
      $region74: #{mobilenetv2_forward.1} parent=5 // pred_region
        %s1770 = ssub.s32 %s10, 2
        // Predicated region
        $region76: #{mobilenetv2_forward.1} parent=74 // pred_check
          %p1771 = pneg %p157
        $region77: #{mobilenetv2_forward.1} parent=74 // pred_check_branch
          %1773 = sbr.rel (%p1771) target = $region79
        $region78: #{mobilenetv2_forward.1} parent=74 // pred_region
          %p1774 = scmp.lt.s32.totalorder %s21, 1
          %s1775 = scalar_select %p1774, %s21, 1
          %s1776 = smul.addr %s1775, 8
          %s1777 = scalar_lea.vmem %s4, %s1776
        $region79: #{mobilenetv2_forward.1} parent=74 // pred_fallthru
          _
      $region75: #{mobilenetv2_forward.1} parent=5 // pred_fallthru
        _
    $region6: #{mobilenetv2_forward.1} parent=1 // loop_footer
      %s14 = sadd.s32 1, %s10
    $region7: #{mobilenetv2_forward.1} parent=1 // loop_footer_branch
      %9 = sbr.rel target = $region3
    $region8: #{mobilenetv2_forward.1} parent=1 // loop_exit
      _

</llo_original>
